<compile_context>
chip_gen: v7x
topology: tpu7x:2x2x1
jax: 0.10.0
libtpu: 0.0.40
codegen_flags: <defaults>
</compile_context>

<pallas_src>
import jax
import jax.numpy as jnp
from jax.experimental import pallas as pl
from jax.experimental.pallas import tpu as pltpu


def _round_up(v, m):
    return (v + m - 1) // m * m


def _attention_mil_kernel(x_ref, w1_ref, b1_ref, w2t_ref, b2_ref, wct_ref,
                          bc_ref, yprob_ref, a_ref):
    """TB bags per grid step.

    x (TB, N, L) bf16, w1 (L, D) bf16, b1 (1, D) f32, w2^T (1, D) f32,
    wc^T (1, L) f32, b2 / bc scalars in SMEM.
    Outputs: yprob (TB, 1, 1) f32, a (TB, 1, N) f32 (lane-dense).
    """
    TB, N, L = x_ref.shape
    D = w1_ref.shape[1]

    x_bf = x_ref[...]                                     # (TB, N, L) bf16
    x_f32 = x_bf.astype(jnp.float32)

    # ---- attention MLP on all TB bags at once (MXU sees TB*N rows) --------
    x_flat = x_bf.reshape(TB * N, L)                      # free: merges leading dims
    h = jnp.tanh(
        jnp.dot(x_flat, w1_ref[...], preferred_element_type=jnp.float32)
        + b1_ref[...])                                    # (TB*N, D) f32
    h3 = h.reshape(TB, N, D)                              # free: split leading dim back
    s = jnp.sum(h3 * w2t_ref[...], axis=2, keepdims=True) + b2_ref[0, 0]   # (TB, N, 1)

    # ---- per-bag softmax over instances (sublane axis), exact division ----
    s_max = jnp.max(s, axis=1, keepdims=True)             # (TB, 1, 1)
    e = jnp.exp(s - s_max)
    a = e / jnp.sum(e, axis=1, keepdims=True)             # (TB, N, 1) f32

    # ---- bag embedding M = A @ x (broadcast-mul + sublane reduction) ------
    m = jnp.sum(a * x_f32, axis=1, keepdims=True)         # (TB, 1, L) f32

    # ---- classifier Linear(L*K, 1) -> sigmoid ------------------------------
    logit = jnp.sum(m * wct_ref[...], axis=2, keepdims=True) + bc_ref[0, 0]  # (TB, 1, 1)
    yprob_ref[...] = jax.nn.sigmoid(logit)

    # ---- lane-dense A writeback (N on the lane axis) -----------------------
    a_ref[...] = jnp.swapaxes(a, 1, 2)                    # (TB, 1, N)


def attention_mil_forward(x, params):
    """Batched Attention-MIL forward.

    x: (B, N, L) batch of bags, or a single (N, L) bag.
    Returns (Y_prob, Y_hat, A) with per-bag shapes (K, 1), (K, 1), (K, N),
    stacked along a leading batch axis when the input is batched.
    K must be 1 (the PyTorch classifier Linear(L*K, 1) applied to (K, L)
    only type-checks for K == 1).
    """
    single = x.ndim == 2
    if single:
        x = x[None]
    B, N, L = x.shape
    D = params["w1"].shape[1]
    K = params["w2"].shape[1]
    assert K == 1, "classifier Linear(L*K, 1) on (K, L) requires K == 1"
    assert params["wc"].shape[0] == L * K

    # Bags per grid step: target >= 256 MXU rows per matmul (v6e/v7x width),
    # but keep at least 2 grid steps when B > 1 so both v7x TCs get work.
    TB = max(1, min(B, max(1, 256 // max(N, 1))))
    if B > 1 and TB >= B:
        TB = (B + 1) // 2
    Bp = _round_up(B, TB)
    grid = (Bp // TB,)

    # Pad only along the batch axis (feature dims stay unpadded). Padded bags
    # of zeros produce a uniform softmax, are finite, and are sliced off below.
    x_p = x if Bp == B else jnp.pad(x, ((0, Bp - B), (0, 0), (0, 0)))

    # bf16 MXU operands (halves HBM traffic of the dominant tensor); all
    # elementwise / reduction math stays f32 inside the kernel.
    x_bf = x_p.astype(jnp.bfloat16)
    w1_bf = params["w1"].astype(jnp.bfloat16)
    b1 = params["b1"].reshape(1, D).astype(jnp.float32)
    w2t = params["w2"].T.astype(jnp.float32)              # (K, D)
    wct = params["wc"].T.astype(jnp.float32)              # (K, L)  (K == 1)
    b2 = params["b2"].reshape(1, 1).astype(jnp.float32)
    bc = params["bc"].reshape(1, 1).astype(jnp.float32)

    def fixed(shape):
        # Constant block index -> Pallas keeps the block resident across steps.
        return pl.BlockSpec(shape, lambda g: (0,) * len(shape))

    smem = pl.BlockSpec(memory_space=pltpu.MemorySpace.SMEM)

    y_prob3, a3 = pl.pallas_call(
        _attention_mil_kernel,
        out_shape=(
            jax.ShapeDtypeStruct((Bp, 1, 1), jnp.float32),   # Y_prob
            jax.ShapeDtypeStruct((Bp, K, N), jnp.float32),   # A, lane-dense
        ),
        grid=grid,
        in_specs=[
            pl.BlockSpec((TB, N, L), lambda g: (g, 0, 0)),   # x: TB bags / step
            fixed((L, D)),                                   # w1 (bf16)
            fixed((1, D)),                                   # b1
            fixed((K, D)),                                   # w2^T
            smem,                                            # b2 scalar
            fixed((K, L)),                                   # wc^T
            smem,                                            # bc scalar
        ],
        out_specs=(
            pl.BlockSpec((TB, 1, 1), lambda g: (g, 0, 0)),
            pl.BlockSpec((TB, K, N), lambda g: (g, 0, 0)),
        ),
        compiler_params=pltpu.CompilerParams(
            dimension_semantics=("parallel",)),
    )(x_bf, w1_bf, b1, w2t, b2, wct, bc)

    y_prob = y_prob3[:B]                                 # (B, K, 1)
    a = a3[:B]                                           # (B, K, N)
    y_hat = (y_prob >= 0.5).astype(jnp.float32)          # trivial threshold in XLA
    if single:
        return y_prob[0], y_hat[0], a[0]
    return y_prob, y_hat, a


def init_params(key, L, D, K):
    """nn.Linear-style parameters, stored pre-transposed as (in, out)."""
    k1, k2, k3, k4, k5, k6 = jax.random.split(key, 6)
    return {
        "w1": jax.random.normal(k1, (L, D), jnp.float32) * 0.1,
        "b1": jax.random.normal(k2, (1, D), jnp.float32) * 0.1,
        "w2": jax.random.normal(k3, (D, K), jnp.float32) * 0.1,
        "b2": jax.random.normal(k4, (1, K), jnp.float32) * 0.1,
        "wc": jax.random.normal(k5, (L * K, 1), jnp.float32) * 0.1,
        "bc": jax.random.normal(k6, (1, 1), jnp.float32) * 0.1,
    }


def reference_forward(x, p):
    """Pure-JAX (f32) per-bag reference of the PyTorch forward."""
    h = jnp.tanh(x @ p["w1"] + p["b1"])
    s = h @ p["w2"] + p["b2"]
    a = jax.nn.softmax(s.T, axis=1)                                   # (K, N)
    m = a @ x                                                         # (K, L)
    y_prob = jax.nn.sigmoid(m.reshape(1, -1) @ p["wc"] + p["bc"])     # (1, 1)
    y_hat = (y_prob >= 0.5).astype(jnp.float32)
    return y_prob, y_hat, a


if __name__ == "__main__":
    # Small shapes consistent with the module: B bags of N instances with L
    # features each; K must be 1. B=32, N=16 -> TB=16, grid=(2,), 256 MXU rows.
    B, N, L, D, K = 32, 16, 32, 16, 1

    key = jax.random.PRNGKey(0)
    kx, kp = jax.random.split(key)
    x = jax.random.normal(kx, (B, N, L), jnp.float32)
    params = init_params(kp, L, D, K)

    fwd = jax.jit(attention_mil_forward)
    y_prob, y_hat, a = fwd(x, params)
    jax.block_until_ready((y_prob, y_hat, a))

    # Correctness vs. pure-JAX f32 reference (vmapped over bags).
    y_prob_r, y_hat_r, a_r = jax.vmap(lambda xb: reference_forward(xb, params))(x)

    assert y_prob.shape == (B, K, 1) and y_hat.shape == (B, K, 1) and a.shape == (B, K, N)
    assert jnp.allclose(y_prob, y_prob_r, atol=5e-3), "Y_prob mismatch"
    assert jnp.allclose(a, a_r, atol=5e-3), "A mismatch"
    # Y_hat may only legitimately differ when the probability sits within the
    # bf16-matmul tolerance of exactly 0.5.
    decided = jnp.abs(y_prob_r - 0.5) > 5e-3
    assert bool(jnp.all(jnp.where(decided, y_hat == y_hat_r, True))), "Y_hat mismatch"

    print("KERNEL_OK")
</pallas_src>

<mosaic_0001>
module attributes {stable_mosaic.version = 11 : i64} {
  func.func @_attention_mil_kernel(%arg0: i32, %arg1: memref<16x16x32xbf16, #tpu.memory_space<vmem>>, %arg2: memref<32x16xbf16, #tpu.memory_space<vmem>>, %arg3: memref<1x16xf32, #tpu.memory_space<vmem>>, %arg4: memref<1x16xf32, #tpu.memory_space<vmem>>, %arg5: memref<1x1xf32, #tpu.memory_space<smem>>, %arg6: memref<1x32xf32, #tpu.memory_space<vmem>>, %arg7: memref<1x1xf32, #tpu.memory_space<smem>>, %arg8: memref<16x1x1xf32, #tpu.memory_space<vmem>>, %arg9: memref<16x1x16xf32, #tpu.memory_space<vmem>>) attributes {dimension_semantics = [#tpu.dimension_semantics<parallel>], iteration_bounds = array<i64: 2>, scalar_prefetch = 0 : i64, scratch_operands = 0 : i64, tpu.core_type = #tpu.core_type<tc>, window_params = [{transform_indices = @transform_0, window_bounds = array<i64: 16, 16, 32>}, {pipeline_mode = #tpu.pipeline_mode<synchronous>, transform_indices = @transform_1, window_bounds = array<i64: 32, 16>}, {pipeline_mode = #tpu.pipeline_mode<synchronous>, transform_indices = @transform_2, window_bounds = array<i64: 1, 16>}, {pipeline_mode = #tpu.pipeline_mode<synchronous>, transform_indices = @transform_3, window_bounds = array<i64: 1, 16>}, {transform_indices = @transform_4, window_bounds = array<i64: 1, 1>}, {pipeline_mode = #tpu.pipeline_mode<synchronous>, transform_indices = @transform_5, window_bounds = array<i64: 1, 32>}, {transform_indices = @transform_6, window_bounds = array<i64: 1, 1>}, {transform_indices = @transform_7, window_bounds = array<i64: 16, 1, 1>}, {transform_indices = @transform_8, window_bounds = array<i64: 16, 1, 16>}]} {
    %c0 = arith.constant 0 : index
    %c0_0 = arith.constant 0 : index
    %c0_1 = arith.constant 0 : index
    %0 = vector.load %arg1[%c0, %c0_0, %c0_1] : memref<16x16x32xbf16, #tpu.memory_space<vmem>>, vector<16x16x32xbf16>
    %1 = arith.extf %0 : vector<16x16x32xbf16> to vector<16x16x32xf32>
    %2 = vector.shape_cast %0 : vector<16x16x32xbf16> to vector<256x32xbf16>
    %c0_2 = arith.constant 0 : index
    %c0_3 = arith.constant 0 : index
    %3 = vector.load %arg2[%c0_2, %c0_3] : memref<32x16xbf16, #tpu.memory_space<vmem>>, vector<32x16xbf16>
    %cst = arith.constant dense<0.000000e+00> : vector<256x16xf32>
    %4 = tpu.matmul %2, %3, %cst {dimension_numbers = #tpu.dot_dimension_numbers<[1], [0], [0], [1], [0, 0, 1, 1], [], []>} : vector<256x32xbf16>, vector<32x16xbf16>, vector<256x16xf32> -> vector<256x16xf32>
    %c0_4 = arith.constant 0 : index
    %c0_5 = arith.constant 0 : index
    %5 = vector.load %arg3[%c0_4, %c0_5] : memref<1x16xf32, #tpu.memory_space<vmem>>, vector<1x16xf32>
    %6 = vector.broadcast %5 : vector<1x16xf32> to vector<256x16xf32>
    %7 = arith.addf %4, %6 : vector<256x16xf32>
    %8 = math.tanh %7 : vector<256x16xf32>
    %9 = vector.shape_cast %8 : vector<256x16xf32> to vector<16x16x16xf32>
    %c0_6 = arith.constant 0 : index
    %c0_7 = arith.constant 0 : index
    %10 = vector.load %arg4[%c0_6, %c0_7] : memref<1x16xf32, #tpu.memory_space<vmem>>, vector<1x16xf32>
    %11 = vector.shape_cast %10 : vector<1x16xf32> to vector<1x1x16xf32>
    %12 = vector.broadcast %11 : vector<1x1x16xf32> to vector<16x16x16xf32>
    %13 = arith.mulf %9, %12 : vector<16x16x16xf32>
    %cst_8 = arith.constant dense<0.000000e+00> : vector<16x16xf32>
    %14 = vector.multi_reduction <add>, %13, %cst_8 [2] : vector<16x16x16xf32> to vector<16x16xf32>
    %15 = vector.shape_cast %14 : vector<16x16xf32> to vector<16x16x1xf32>
    %c0_9 = arith.constant 0 : index
    %c0_10 = arith.constant 0 : index
    %16 = memref.load %arg5[%c0_9, %c0_10] : memref<1x1xf32, #tpu.memory_space<smem>>
    %17 = vector.broadcast %16 : f32 to vector<16x16x1xf32>
    %18 = arith.addf %15, %17 : vector<16x16x1xf32>
    %cst_11 = arith.constant dense<0xFF800000> : vector<16x1xf32>
    %19 = vector.multi_reduction <maximumf>, %18, %cst_11 [1] : vector<16x16x1xf32> to vector<16x1xf32>
    %20 = vector.shape_cast %19 : vector<16x1xf32> to vector<16x1x1xf32>
    %21 = vector.broadcast %20 : vector<16x1x1xf32> to vector<16x16x1xf32>
    %22 = arith.subf %18, %21 : vector<16x16x1xf32>
    %23 = math.exp %22 : vector<16x16x1xf32>
    %cst_12 = arith.constant dense<0.000000e+00> : vector<16x1xf32>
    %24 = vector.multi_reduction <add>, %23, %cst_12 [1] : vector<16x16x1xf32> to vector<16x1xf32>
    %25 = vector.shape_cast %24 : vector<16x1xf32> to vector<16x1x1xf32>
    %26 = vector.broadcast %25 : vector<16x1x1xf32> to vector<16x16x1xf32>
    %27 = arith.divf %23, %26 : vector<16x16x1xf32>
    %28 = vector.broadcast %27 : vector<16x16x1xf32> to vector<16x16x32xf32>
    %29 = arith.mulf %28, %1 : vector<16x16x32xf32>
    %cst_13 = arith.constant dense<0.000000e+00> : vector<16x32xf32>
    %30 = vector.multi_reduction <add>, %29, %cst_13 [1] : vector<16x16x32xf32> to vector<16x32xf32>
    %31 = vector.shape_cast %30 : vector<16x32xf32> to vector<16x1x32xf32>
    %c0_14 = arith.constant 0 : index
    %c0_15 = arith.constant 0 : index
    %32 = vector.load %arg6[%c0_14, %c0_15] : memref<1x32xf32, #tpu.memory_space<vmem>>, vector<1x32xf32>
    %33 = vector.shape_cast %32 : vector<1x32xf32> to vector<1x1x32xf32>
    %34 = vector.broadcast %33 : vector<1x1x32xf32> to vector<16x1x32xf32>
    %35 = arith.mulf %31, %34 : vector<16x1x32xf32>
    %cst_16 = arith.constant dense<0.000000e+00> : vector<16x1xf32>
    %36 = vector.multi_reduction <add>, %35, %cst_16 [2] : vector<16x1x32xf32> to vector<16x1xf32>
    %37 = vector.shape_cast %36 : vector<16x1xf32> to vector<16x1x1xf32>
    %c0_17 = arith.constant 0 : index
    %c0_18 = arith.constant 0 : index
    %38 = memref.load %arg7[%c0_17, %c0_18] : memref<1x1xf32, #tpu.memory_space<smem>>
    %39 = vector.broadcast %38 : f32 to vector<16x1x1xf32>
    %40 = arith.addf %37, %39 : vector<16x1x1xf32>
    %41 = arith.negf %40 : vector<16x1x1xf32>
    %42 = math.exp %41 : vector<16x1x1xf32>
    %cst_19 = arith.constant 1.000000e+00 : f32
    %43 = vector.broadcast %cst_19 : f32 to vector<16x1x1xf32>
    %44 = arith.addf %43, %42 : vector<16x1x1xf32>
    %45 = arith.divf %43, %44 : vector<16x1x1xf32>
    %c0_20 = arith.constant 0 : index
    %c0_21 = arith.constant 0 : index
    %c0_22 = arith.constant 0 : index
    %46 = vector.load %arg8[%c0_20, %c0_21, %c0_22] : memref<16x1x1xf32, #tpu.memory_space<vmem>>, vector<16x1x1xf32>
    tpu.vector_store %arg8[%c0_20, %c0_21, %c0_22], %45 {strides = array<i32>} : memref<16x1x1xf32, #tpu.memory_space<vmem>>, vector<16x1x1xf32>,
    %47 = tpu.transpose %27, [0, 2, 1] : vector<16x16x1xf32> -> vector<16x1x16xf32>
    %c0_23 = arith.constant 0 : index
    %c0_24 = arith.constant 0 : index
    %c0_25 = arith.constant 0 : index
    %48 = vector.load %arg9[%c0_23, %c0_24, %c0_25] : memref<16x1x16xf32, #tpu.memory_space<vmem>>, vector<16x1x16xf32>
    tpu.vector_store %arg9[%c0_23, %c0_24, %c0_25], %47 {strides = array<i32>} : memref<16x1x16xf32, #tpu.memory_space<vmem>>, vector<16x1x16xf32>,
    return
  }
  func.func @transform_0(%arg0: i32) -> (i32, i32, i32) {
    %c0_i32 = arith.constant 0 : i32
    %c0_i32_0 = arith.constant 0 : i32
    %c0_i32_1 = arith.constant 0 : i32
    return %arg0, %c0_i32, %c0_i32_0 : i32, i32, i32
  }
  func.func @transform_1(%arg0: i32) -> (i32, i32) {
    %c0_i32 = arith.constant 0 : i32
    %c0_i32_0 = arith.constant 0 : i32
    %c0_i32_1 = arith.constant 0 : i32
    return %c0_i32, %c0_i32_0 : i32, i32
  }
  func.func @transform_2(%arg0: i32) -> (i32, i32) {
    %c0_i32 = arith.constant 0 : i32
    %c0_i32_0 = arith.constant 0 : i32
    %c0_i32_1 = arith.constant 0 : i32
    return %c0_i32, %c0_i32_0 : i32, i32
  }
  func.func @transform_3(%arg0: i32) -> (i32, i32) {
    %c0_i32 = arith.constant 0 : i32
    %c0_i32_0 = arith.constant 0 : i32
    %c0_i32_1 = arith.constant 0 : i32
    return %c0_i32, %c0_i32_0 : i32, i32
  }
  func.func @transform_4(%arg0: i32) -> (i32, i32) {
    %c0_i32 = arith.constant 0 : i32
    %c0_i32_0 = arith.constant 0 : i32
    %c0_i32_1 = arith.constant 0 : i32
    return %c0_i32, %c0_i32_0 : i32, i32
  }
  func.func @transform_5(%arg0: i32) -> (i32, i32) {
    %c0_i32 = arith.constant 0 : i32
    %c0_i32_0 = arith.constant 0 : i32
    %c0_i32_1 = arith.constant 0 : i32
    return %c0_i32, %c0_i32_0 : i32, i32
  }
  func.func @transform_6(%arg0: i32) -> (i32, i32) {
    %c0_i32 = arith.constant 0 : i32
    %c0_i32_0 = arith.constant 0 : i32
    %c0_i32_1 = arith.constant 0 : i32
    return %c0_i32, %c0_i32_0 : i32, i32
  }
  func.func @transform_7(%arg0: i32) -> (i32, i32, i32) {
    %c0_i32 = arith.constant 0 : i32
    %c0_i32_0 = arith.constant 0 : i32
    %c0_i32_1 = arith.constant 0 : i32
    return %arg0, %c0_i32, %c0_i32_0 : i32, i32, i32
  }
  func.func @transform_8(%arg0: i32) -> (i32, i32, i32) {
    %c0_i32 = arith.constant 0 : i32
    %c0_i32_0 = arith.constant 0 : i32
    %c0_i32_1 = arith.constant 0 : i32
    return %arg0, %c0_i32, %c0_i32_0 : i32, i32, i32
  }
}

</mosaic_0001>

<llo_original>
// kernel: attention_mil_forward.1
$region0: #{attention_mil_forward.1}
  #allocation0 [shape = 'u32[]', space=smem, size = 0x4, offset = 0x4, fixed_abs, tag = 'smem constant byte address 0x4 - core index']
  #allocation1 [shape = 'u32[144,128]{1,0:T(1,128)}', space=vmem, size = 0x12000, scoped, tag = 'internal scratch']
  #allocation2 [shape = 'f32[1,1]{1,0:T(1,128)S(6)}', space=smem, size = 0x200, scoped, tag = 'scoped memory for attention_mil_forward.1']
  #allocation3 [shape = 'f32[1,1]{1,0:T(1,128)S(6)}', space=smem, size = 0x200, scoped, tag = 'scoped memory for attention_mil_forward.1']
  %s0 = inlined_call_operand.vmem [shape: bf16[32,16,32], index: 0, kind: input, shape index: {}]
  %s1 = inlined_call_operand.vmem [shape: bf16[32,16], index: 1, kind: input, shape index: {}]
  %s2 = inlined_call_operand.vmem [shape: f32[1,16], index: 2, kind: input, shape index: {}]
  %s3 = inlined_call_operand.vmem [shape: f32[1,16], index: 3, kind: input, shape index: {}]
  %s4 = inlined_call_operand.<no memory space> [shape: f32[1,1], index: 4, kind: input, shape index: {}]
  %s5 = inlined_call_operand.vmem [shape: f32[1,32], index: 5, kind: input, shape index: {}]
  %s6 = inlined_call_operand.<no memory space> [shape: f32[1,1], index: 6, kind: input, shape index: {}]
  %s7 = inlined_call_operand.vmem [shape: f32[32,1,1], index: 7, kind: output, shape index: {0}]
  %s8 = inlined_call_operand.vmem [shape: f32[32,1,16], index: 8, kind: output, shape index: {1}]
  %9 = xla_tuple %s7, %s8
  %s10 = sld [smem:[#allocation0]]
  $region69: #{attention_mil_forward.1} parent=0
    _
  %s12 = ssub.s32 1, %s10
  %s13 = scalar_select 0, %s12, %s10
  %14 = sst [smem:[#allocation2]] %s4
  %15 = sst [smem:[#allocation3]] %s6
  loop: start=0, step=1, limit=4
  $region2: #{attention_mil_forward.1} parent=0 // loop_pre_header
    _
  $region3: #{attention_mil_forward.1} parent=0 // loop_header
    %s17 = sphi 0, %s21
    %p18 = scmp.ge.s32.totalorder %s17, 4
    %s27 = sphi 0, %s29
    %s30 = sphi 0, %s27
    %s31 = sphi 0, %s30
    %s47 = sphi 0, %s31
    %s51 = sphi 0, %s51
    %s53 = sphi 0, %s51
    %s54 = sphi 0, %s53
    %s68 = sphi 0, %s54
    %s72 = sphi 0, %s72
    %s74 = sphi 0, %s72
    %s75 = sphi 0, %s74
    %s89 = sphi 0, %s75
    %s93 = sphi 0, %s93
    %s95 = sphi 0, %s93
    %s96 = sphi 0, %s95
    %s110 = sphi 0, %s96
    %s114 = sphi 0, %s114
    %s116 = sphi 0, %s114
    %s117 = sphi 0, %s116
    %s131 = sphi 0, %s117
    %s135 = sphi 0, %s135
    %s137 = sphi 0, %s135
    %s138 = sphi 0, %s137
    %s152 = sphi 0, %s138
    %s156 = sphi 0, %s156
    %s158 = sphi 0, %s156
    %s159 = sphi 0, %s158
    %s173 = sphi 0, %s159
    %s179 = sphi 0, %s181
    %s182 = sphi 0, %s179
    %s183 = sphi 0, %s182
    %s199 = sphi 0, %s183
    %s205 = sphi 0, %s207
    %s208 = sphi 0, %s205
    %s209 = sphi 0, %s208
    %s225 = sphi 0, %s209
  $region4: #{attention_mil_forward.1} parent=0 // loop_header_branch
    %20 = sbr.rel (%p18) target = $region8
  $region5: #{attention_mil_forward.1} parent=0 // loop_body
    %s22 = ssub.s32 %s17, 1
    %s23 = ssub.s32 %s17, 2
    %s24 = sadd.s32 %s17, 1
    %s25 = ssub.s32 %s17, %s24
    %p26 = scmp.eq.s32.totalorder %s25, 0
    %s28 = sadd.s32 %s27, 1
    %s29 = scalar_select %p26, %s27, %s28
    %p32 = pneg %p26
    %p33 = scmp.eq.s32.totalorder %s17, 1
    %p34 = por %p32, %p33
    %p35 = scmp.ne.s32.totalorder %s27, %s30
    %p36 = scmp.eq.s32.totalorder %s17, 0
    %p37 = por %p35, %p36
    %p38 = scmp.ne.s32.totalorder %s27, %s30
    %p39 = scmp.eq.s32.totalorder %s22, 1
    %p40 = por %p38, %p39
    %p41 = scmp.ne.s32.totalorder %s30, %s31
    %p42 = scmp.eq.s32.totalorder %s22, 0
    %p43 = por %p41, %p42
    %p44 = scmp.ne.s32.totalorder %s30, %s31
    %p45 = scmp.eq.s32.totalorder %s23, 1
    %p46 = por %p44, %p45
    %p48 = scmp.ne.s32.totalorder %s31, %s47
    %p49 = scmp.eq.s32.totalorder %s23, 0
    %p50 = por %p48, %p49
    %s52 = sadd.s32 %s51, 1
    %p55 = scmp.eq.s32.totalorder %s17, 1
    %p56 = scmp.ne.s32.totalorder %s51, %s53
    %p57 = scmp.eq.s32.totalorder %s17, 0
    %p58 = por %p56, %p57
    %p59 = scmp.ne.s32.totalorder %s51, %s53
    %p60 = scmp.eq.s32.totalorder %s22, 1
    %p61 = por %p59, %p60
    %p62 = scmp.ne.s32.totalorder %s53, %s54
    %p63 = scmp.eq.s32.totalorder %s22, 0
    %p64 = por %p62, %p63
    %p65 = scmp.ne.s32.totalorder %s53, %s54
    %p66 = scmp.eq.s32.totalorder %s23, 1
    %p67 = por %p65, %p66
    %p69 = scmp.ne.s32.totalorder %s54, %s68
    %p70 = scmp.eq.s32.totalorder %s23, 0
    %p71 = por %p69, %p70
    %s73 = sadd.s32 %s72, 1
    %p76 = scmp.eq.s32.totalorder %s17, 1
    %p77 = scmp.ne.s32.totalorder %s72, %s74
    %p78 = scmp.eq.s32.totalorder %s17, 0
    %p79 = por %p77, %p78
    %p80 = scmp.ne.s32.totalorder %s72, %s74
    %p81 = scmp.eq.s32.totalorder %s22, 1
    %p82 = por %p80, %p81
    %p83 = scmp.ne.s32.totalorder %s74, %s75
    %p84 = scmp.eq.s32.totalorder %s22, 0
    %p85 = por %p83, %p84
    %p86 = scmp.ne.s32.totalorder %s74, %s75
    %p87 = scmp.eq.s32.totalorder %s23, 1
    %p88 = por %p86, %p87
    %p90 = scmp.ne.s32.totalorder %s75, %s89
    %p91 = scmp.eq.s32.totalorder %s23, 0
    %p92 = por %p90, %p91
    %s94 = sadd.s32 %s93, 1
    %p97 = scmp.eq.s32.totalorder %s17, 1
    %p98 = scmp.ne.s32.totalorder %s93, %s95
    %p99 = scmp.eq.s32.totalorder %s17, 0
    %p100 = por %p98, %p99
    %p101 = scmp.ne.s32.totalorder %s93, %s95
    %p102 = scmp.eq.s32.totalorder %s22, 1
    %p103 = por %p101, %p102
    %p104 = scmp.ne.s32.totalorder %s95, %s96
    %p105 = scmp.eq.s32.totalorder %s22, 0
    %p106 = por %p104, %p105
    %p107 = scmp.ne.s32.totalorder %s95, %s96
    %p108 = scmp.eq.s32.totalorder %s23, 1
    %p109 = por %p107, %p108
    %p111 = scmp.ne.s32.totalorder %s96, %s110
    %p112 = scmp.eq.s32.totalorder %s23, 0
    %p113 = por %p111, %p112
    %s115 = sadd.s32 %s114, 1
    %p118 = scmp.eq.s32.totalorder %s17, 1
    %p119 = scmp.ne.s32.totalorder %s114, %s116
    %p120 = scmp.eq.s32.totalorder %s17, 0
    %p121 = por %p119, %p120
    %p122 = scmp.ne.s32.totalorder %s114, %s116
    %p123 = scmp.eq.s32.totalorder %s22, 1
    %p124 = por %p122, %p123
    %p125 = scmp.ne.s32.totalorder %s116, %s117
    %p126 = scmp.eq.s32.totalorder %s22, 0
    %p127 = por %p125, %p126
    %p128 = scmp.ne.s32.totalorder %s116, %s117
    %p129 = scmp.eq.s32.totalorder %s23, 1
    %p130 = por %p128, %p129
    %p132 = scmp.ne.s32.totalorder %s117, %s131
    %p133 = scmp.eq.s32.totalorder %s23, 0
    %p134 = por %p132, %p133
    %s136 = sadd.s32 %s135, 1
    %p139 = scmp.eq.s32.totalorder %s17, 1
    %p140 = scmp.ne.s32.totalorder %s135, %s137
    %p141 = scmp.eq.s32.totalorder %s17, 0
    %p142 = por %p140, %p141
    %p143 = scmp.ne.s32.totalorder %s135, %s137
    %p144 = scmp.eq.s32.totalorder %s22, 1
    %p145 = por %p143, %p144
    %p146 = scmp.ne.s32.totalorder %s137, %s138
    %p147 = scmp.eq.s32.totalorder %s22, 0
    %p148 = por %p146, %p147
    %p149 = scmp.ne.s32.totalorder %s137, %s138
    %p150 = scmp.eq.s32.totalorder %s23, 1
    %p151 = por %p149, %p150
    %p153 = scmp.ne.s32.totalorder %s138, %s152
    %p154 = scmp.eq.s32.totalorder %s23, 0
    %p155 = por %p153, %p154
    %s157 = sadd.s32 %s156, 1
    %p160 = scmp.eq.s32.totalorder %s17, 1
    %p161 = scmp.ne.s32.totalorder %s156, %s158
    %p162 = scmp.eq.s32.totalorder %s17, 0
    %p163 = por %p161, %p162
    %p164 = scmp.ne.s32.totalorder %s156, %s158
    %p165 = scmp.eq.s32.totalorder %s22, 1
    %p166 = por %p164, %p165
    %p167 = scmp.ne.s32.totalorder %s158, %s159
    %p168 = scmp.eq.s32.totalorder %s22, 0
    %p169 = por %p167, %p168
    %p170 = scmp.ne.s32.totalorder %s158, %s159
    %p171 = scmp.eq.s32.totalorder %s23, 1
    %p172 = por %p170, %p171
    %p174 = scmp.ne.s32.totalorder %s159, %s173
    %p175 = scmp.eq.s32.totalorder %s23, 0
    %p176 = por %p174, %p175
    %s177 = ssub.s32 %s17, %s24
    %p178 = scmp.eq.s32.totalorder %s177, 0
    %s180 = sadd.s32 %s179, 1
    %s181 = scalar_select %p178, %s179, %s180
    %p184 = pneg %p178
    %p185 = scmp.eq.s32.totalorder %s17, 1
    %p186 = por %p184, %p185
    %p187 = scmp.ne.s32.totalorder %s179, %s182
    %p188 = scmp.eq.s32.totalorder %s17, 0
    %p189 = por %p187, %p188
    %p190 = scmp.ne.s32.totalorder %s179, %s182
    %p191 = scmp.eq.s32.totalorder %s22, 1
    %p192 = por %p190, %p191
    %p193 = scmp.ne.s32.totalorder %s182, %s183
    %p194 = scmp.eq.s32.totalorder %s22, 0
    %p195 = por %p193, %p194
    %p196 = scmp.ne.s32.totalorder %s182, %s183
    %p197 = scmp.eq.s32.totalorder %s23, 1
    %p198 = por %p196, %p197
    %p200 = scmp.ne.s32.totalorder %s183, %s199
    %p201 = scmp.eq.s32.totalorder %s23, 0
    %p202 = por %p200, %p201
    %s203 = ssub.s32 %s17, %s24
    %p204 = scmp.eq.s32.totalorder %s203, 0
    %s206 = sadd.s32 %s205, 1
    %s207 = scalar_select %p204, %s205, %s206
    %p210 = pneg %p204
    %p211 = scmp.eq.s32.totalorder %s17, 1
    %p212 = por %p210, %p211
    %p213 = scmp.ne.s32.totalorder %s205, %s208
    %p214 = scmp.eq.s32.totalorder %s17, 0
    %p215 = por %p213, %p214
    %p216 = scmp.ne.s32.totalorder %s205, %s208
    %p217 = scmp.eq.s32.totalorder %s22, 1
    %p218 = por %p216, %p217
    %p219 = scmp.ne.s32.totalorder %s208, %s209
    %p220 = scmp.eq.s32.totalorder %s22, 0
    %p221 = por %p219, %p220
    %p222 = scmp.ne.s32.totalorder %s208, %s209
    %p223 = scmp.eq.s32.totalorder %s23, 1
    %p224 = por %p222, %p223
    %p226 = scmp.ne.s32.totalorder %s209, %s225
    %p227 = scmp.eq.s32.totalorder %s23, 0
    %p228 = por %p226, %p227
    %p229 = scmp.le.s32.totalorder 1, %s17
    %p230 = scmp.lt.s32.totalorder %s17, 3
    %p231 = pnand %p229, %p230
    %p232 = pneg %p231
    // Predicated region
    $region9: #{attention_mil_forward.1} parent=5 // pred_check
      _
    $region10: #{attention_mil_forward.1} parent=5 // pred_check_branch
      %234 = sbr.rel (%p231) target = $region12
    $region11: #{attention_mil_forward.1} parent=5 // pred_region
      %s235 = ssub.s32 %s17, 1
      // Predicated region
      $region13: #{attention_mil_forward.1} parent=11 // pred_check
        %p236 = pneg %p64
      $region14: #{attention_mil_forward.1} parent=11 // pred_check_branch
        %238 = sbr.rel (%p236) target = $region16
      $region15: #{attention_mil_forward.1} parent=11 // pred_region
        _
      $region16: #{attention_mil_forward.1} parent=11 // pred_fallthru
        _
      // Predicated region
      $region17: #{attention_mil_forward.1} parent=11 // pred_check
        %p239 = pneg %p85
      $region18: #{attention_mil_forward.1} parent=11 // pred_check_branch
        %241 = sbr.rel (%p239) target = $region20
      $region19: #{attention_mil_forward.1} parent=11 // pred_region
        _
      $region20: #{attention_mil_forward.1} parent=11 // pred_fallthru
        _
      // Predicated region
      $region21: #{attention_mil_forward.1} parent=11 // pred_check
        %p242 = pneg %p106
      $region22: #{attention_mil_forward.1} parent=11 // pred_check_branch
        %244 = sbr.rel (%p242) target = $region24
      $region23: #{attention_mil_forward.1} parent=11 // pred_region
        _
      $region24: #{attention_mil_forward.1} parent=11 // pred_fallthru
        _
      // Predicated region
      $region25: #{attention_mil_forward.1} parent=11 // pred_check
        %p245 = pneg %p127
      $region26: #{attention_mil_forward.1} parent=11 // pred_check_branch
        %247 = sbr.rel (%p245) target = $region28
      $region27: #{attention_mil_forward.1} parent=11 // pred_region
        _
      $region28: #{attention_mil_forward.1} parent=11 // pred_fallthru
        _
      // Predicated region
      $region29: #{attention_mil_forward.1} parent=11 // pred_check
        %p248 = pneg %p148
      $region30: #{attention_mil_forward.1} parent=11 // pred_check_branch
        %250 = sbr.rel (%p248) target = $region32
      $region31: #{attention_mil_forward.1} parent=11 // pred_region
        _
      $region32: #{attention_mil_forward.1} parent=11 // pred_fallthru
        _
      // Predicated region
      $region33: #{attention_mil_forward.1} parent=11 // pred_check
        %p251 = pneg %p169
      $region34: #{attention_mil_forward.1} parent=11 // pred_check_branch
        %253 = sbr.rel (%p251) target = $region36
      $region35: #{attention_mil_forward.1} parent=11 // pred_region
        _
      $region36: #{attention_mil_forward.1} parent=11 // pred_fallthru
        _
    $region12: #{attention_mil_forward.1} parent=5 // pred_fallthru
      _
    %p254 = scmp.lt.s32.totalorder %s17, 2
    // Predicated region
    $region37: #{attention_mil_forward.1} parent=5 // pred_check
      %p255 = pneg %p254
    $region38: #{attention_mil_forward.1} parent=5 // pred_check_branch
      %257 = sbr.rel (%p255) target = $region40
    $region39: #{attention_mil_forward.1} parent=5 // pred_region
      // Predicated region
      $region41: #{attention_mil_forward.1} parent=39 // pred_check
        %p258 = pneg %p37
      $region42: #{attention_mil_forward.1} parent=39 // pred_check_branch
        %260 = sbr.rel (%p258) target = $region44
      $region43: #{attention_mil_forward.1} parent=39 // pred_region
        %s261 = smul.u32 16, %s17
        %p262 = scmp.lt.s32.totalorder %s261, 31
        %s263 = scalar_select %p262, %s261, 31
        %s264 = smul.addr %s263, 2
        %s265 = smul.addr %s264, 4
        %s266 = scalar_lea.vmem %s0, %s265
        %s267 = smul.u32 16, %s17
      $region44: #{attention_mil_forward.1} parent=39 // pred_fallthru
        _
    $region40: #{attention_mil_forward.1} parent=5 // pred_fallthru
      _
    %p268 = scmp.le.s32.totalorder 1, %s17
    %p269 = scmp.lt.s32.totalorder %s17, 3
    %p270 = pnand %p268, %p269
    %p271 = pneg %p270
    // Predicated region
    $region45: #{attention_mil_forward.1} parent=5 // pred_check
      _
    $region46: #{attention_mil_forward.1} parent=5 // pred_check_branch
      %273 = sbr.rel (%p270) target = $region48
    $region47: #{attention_mil_forward.1} parent=5 // pred_region
      %s274 = ssub.s32 %s17, 1
      %s275 = smul.u32 16, %s22
      %p276 = scmp.lt.s32.totalorder %s275, 31
      %s277 = scalar_select %p276, %s275, 31
      %s278 = smul.addr %s277, 2
      %s279 = smul.addr %s278, 4
      %s280 = scalar_lea.vmem %s0, %s279
      %p281 = pneg %p43
      %p282 = pneg %p40
      %p283 = pneg %p64
      %p284 = pneg %p61
      %p285 = pneg %p85
      %p286 = pneg %p82
      %p287 = pneg %p106
      %p288 = pneg %p103
      %p289 = pneg %p127
      %p290 = pneg %p124
      %p291 = pneg %p148
      %p292 = pneg %p145
      %p293 = pneg %p169
      %p294 = pneg %p166
      %p295 = pneg %p195
      %p296 = pneg %p192
      %s297 = smul.u32 16, %s22
      %p298 = scmp.lt.s32.totalorder %s297, 31
      %s299 = scalar_select %p298, %s297, 31
      %s300 = scalar_lea.vmem %s7, %s299
      %p301 = pneg %p221
      %p302 = pneg %p218
      %s303 = smul.u32 16, %s22
      %p304 = scmp.lt.s32.totalorder %s303, 31
      %s305 = scalar_select %p304, %s303, 31
      %s306 = scalar_lea.vmem %s8, %s305
      %s307 = smul.u32 16, %s22
      %p308 = scmp.lt.s32.totalorder %s307, 31
      %s309 = scalar_select %p308, %s307, 31
      %s310 = smul.addr %s309, 2
      %s311 = smul.addr %s310, 4
      %s312 = scalar_lea.vmem %s0, %s311
      %s313 = smul.u32 16, %s22
      %s314 = smul.u32 16, %s22
      %p315 = scmp.lt.s32.totalorder %s314, 31
      %s316 = scalar_select %p315, %s314, 31
      %s317 = scalar_lea.vmem %s7, %s316
      %s318 = smul.u32 16, %s22
      %s319 = smul.u32 16, %s22
      %p320 = scmp.lt.s32.totalorder %s319, 31
      %s321 = scalar_select %p320, %s319, 31
      %s322 = scalar_lea.vmem %s8, %s321
      %s323 = smul.u32 16, %s22
      %v325 = vld [vmem:[%s312] sm:$0xf]
      %v326 = vld [vmem:[%s312 + $0x4] sm:$0xf]
      %v327 = vld [vmem:[%s312 + $0x8] sm:$0xf]
      %v328 = vld [vmem:[%s312 + $0xc] sm:$0xf]
      %v329 = vld [vmem:[%s312 + $0x10] sm:$0xf]
      %v330 = vld [vmem:[%s312 + $0x14] sm:$0xf]
      %v331 = vld [vmem:[%s312 + $0x18] sm:$0xf]
      %v332 = vld [vmem:[%s312 + $0x1c] sm:$0xf]
      %v333 = vld [vmem:[%s312 + $0x20] sm:$0xf]
      %v334 = vld [vmem:[%s312 + $0x24] sm:$0xf]
      %v335 = vld [vmem:[%s312 + $0x28] sm:$0xf]
      %v336 = vld [vmem:[%s312 + $0x2c] sm:$0xf]
      %v337 = vld [vmem:[%s312 + $0x30] sm:$0xf]
      %v338 = vld [vmem:[%s312 + $0x34] sm:$0xf]
      %v339 = vld [vmem:[%s312 + $0x38] sm:$0xf]
      %v340 = vld [vmem:[%s312 + $0x3c] sm:$0xf]
      %v341 = vld [vmem:[%s312 + $0x40] sm:$0xf]
      %v342 = vld [vmem:[%s312 + $0x44] sm:$0xf]
      %v343 = vld [vmem:[%s312 + $0x48] sm:$0xf]
      %v344 = vld [vmem:[%s312 + $0x4c] sm:$0xf]
      %v345 = vld [vmem:[%s312 + $0x50] sm:$0xf]
      %v346 = vld [vmem:[%s312 + $0x54] sm:$0xf]
      %v347 = vld [vmem:[%s312 + $0x58] sm:$0xf]
      %v348 = vld [vmem:[%s312 + $0x5c] sm:$0xf]
      %v349 = vld [vmem:[%s312 + $0x60] sm:$0xf]
      %v350 = vld [vmem:[%s312 + $0x64] sm:$0xf]
      %v351 = vld [vmem:[%s312 + $0x68] sm:$0xf]
      %v352 = vld [vmem:[%s312 + $0x6c] sm:$0xf]
      %v353 = vld [vmem:[%s312 + $0x70] sm:$0xf]
      %v354 = vld [vmem:[%s312 + $0x74] sm:$0xf]
      %v355 = vld [vmem:[%s312 + $0x78] sm:$0xf]
      %v356 = vld [vmem:[%s312 + $0x7c] sm:$0xf]
      %v357 = vunpack.c.l.bf16 %v325
      %v358 = vunpack.c.l.bf16 %v326
      %v359 = vunpack.c.l.bf16 %v327
      %v360 = vunpack.c.l.bf16 %v328
      %v361 = vunpack.c.l.bf16 %v329
      %v362 = vunpack.c.l.bf16 %v330
      %v363 = vunpack.c.l.bf16 %v331
      %v364 = vunpack.c.l.bf16 %v332
      %v365 = vunpack.c.l.bf16 %v333
      %v366 = vunpack.c.l.bf16 %v334
      %v367 = vunpack.c.l.bf16 %v335
      %v368 = vunpack.c.l.bf16 %v336
      %v369 = vunpack.c.l.bf16 %v337
      %v370 = vunpack.c.l.bf16 %v338
      %v371 = vunpack.c.l.bf16 %v339
      %v372 = vunpack.c.l.bf16 %v340
      %v373 = vunpack.c.l.bf16 %v341
      %v374 = vunpack.c.l.bf16 %v342
      %v375 = vunpack.c.l.bf16 %v343
      %v376 = vunpack.c.l.bf16 %v344
      %v377 = vunpack.c.l.bf16 %v345
      %v378 = vunpack.c.l.bf16 %v346
      %v379 = vunpack.c.l.bf16 %v347
      %v380 = vunpack.c.l.bf16 %v348
      %v381 = vunpack.c.l.bf16 %v349
      %v382 = vunpack.c.l.bf16 %v350
      %v383 = vunpack.c.l.bf16 %v351
      %v384 = vunpack.c.l.bf16 %v352
      %v385 = vunpack.c.l.bf16 %v353
      %v386 = vunpack.c.l.bf16 %v354
      %v387 = vunpack.c.l.bf16 %v355
      %v388 = vunpack.c.l.bf16 %v356
      %v389 = vld [vmem:[%s1] sm:$0xf]
      %v390 = vld [vmem:[%s1 + $0x4] sm:$0xf]
      %v391 = vld [vmem:[%s1 + $0x8] sm:$0xf]
      %v392 = vld [vmem:[%s1 + $0xc] sm:$0xf]
      %v393 = vld [vmem:[%s2] sm:$0x1]
      %v395 = vlaneseq
      %v396 = vshrl.u32 %v395, 7
      %v397 = vsub.s32 0, %v396
      %v398 = vrot.slane %v393, %v397
      %v432 = vunpack.c.l.b16 %v325
      %v433 = vunpack.c.l.b16 %v326
      %v434 = vunpack.c.l.b16 %v327
      %v435 = vunpack.c.l.b16 %v328
      %v436 = vunpack.c.l.b16 %v329
      %v437 = vunpack.c.l.b16 %v330
      %v438 = vunpack.c.l.b16 %v331
      %v439 = vunpack.c.l.b16 %v332
      %v440 = vunpack.c.l.b16 %v333
      %v441 = vunpack.c.l.b16 %v334
      %v442 = vunpack.c.l.b16 %v335
      %v443 = vunpack.c.l.b16 %v336
      %v444 = vunpack.c.l.b16 %v337
      %v445 = vunpack.c.l.b16 %v338
      %v446 = vunpack.c.l.b16 %v339
      %v447 = vunpack.c.l.b16 %v340
      %v448 = vunpack.c.l.b16 %v341
      %v449 = vunpack.c.l.b16 %v342
      %v450 = vunpack.c.l.b16 %v343
      %v451 = vunpack.c.l.b16 %v344
      %v452 = vunpack.c.l.b16 %v345
      %v453 = vunpack.c.l.b16 %v346
      %v454 = vunpack.c.l.b16 %v347
      %v455 = vunpack.c.l.b16 %v348
      %v456 = vunpack.c.l.b16 %v349
      %v457 = vunpack.c.l.b16 %v350
      %v458 = vunpack.c.l.b16 %v351
      %v459 = vunpack.c.l.b16 %v352
      %v460 = vunpack.c.l.b16 %v353
      %v461 = vunpack.c.l.b16 %v354
      %v462 = vunpack.c.l.b16 %v355
      %v463 = vunpack.c.l.b16 %v356
      %v464 = vpack.c.b16 %v433, %v432
      %v465 = vpack.c.b16 %v435, %v434
      %v466 = vpack.c.b16 %v437, %v436
      %v467 = vpack.c.b16 %v439, %v438
      %v468 = vpack.c.b16 %v441, %v440
      %v469 = vpack.c.b16 %v443, %v442
      %v470 = vpack.c.b16 %v445, %v444
      %v471 = vpack.c.b16 %v447, %v446
      %v472 = vpack.c.b16 %v449, %v448
      %v473 = vpack.c.b16 %v451, %v450
      %v474 = vpack.c.b16 %v453, %v452
      %v475 = vpack.c.b16 %v455, %v454
      %v476 = vpack.c.b16 %v457, %v456
      %v477 = vpack.c.b16 %v459, %v458
      %v478 = vpack.c.b16 %v461, %v460
      %v479 = vpack.c.b16 %v463, %v462
      %v484 = vunpack.c.l.b16 %v389
      %v485 = vunpack.c.l.b16 %v390
      %v486 = vunpack.c.l.b16 %v391
      %v487 = vunpack.c.l.b16 %v392
      %v488 = vpack.c.b16 %v485, %v484
      %v489 = vpack.c.b16 %v487, %v486
      %vm492 = vcmask 261120
      %v494 = vsel %vm492, %v464, 0
      %v497 = vsel %vm492, %v465, 0
      %v500 = vsel %vm492, %v466, 0
      %v503 = vsel %vm492, %v467, 0
      %v506 = vsel %vm492, %v468, 0
      %v509 = vsel %vm492, %v469, 0
      %v512 = vsel %vm492, %v470, 0
      %v515 = vsel %vm492, %v471, 0
      %v518 = vsel %vm492, %v472, 0
      %v521 = vsel %vm492, %v473, 0
      %v524 = vsel %vm492, %v474, 0
      %v527 = vsel %vm492, %v475, 0
      %v530 = vsel %vm492, %v476, 0
      %v533 = vsel %vm492, %v477, 0
      %v536 = vsel %vm492, %v478, 0
      %v539 = vsel %vm492, %v479, 0
      %541 = vmatprep.subr.bf16.mxu0 0
      %542 = vmatpush1.bf16.msra.mxu0 %v488
      %543 = vmatprep.subr.bf16.mxu0 0
      %544 = vmatpush1.bf16.msra.mxu0 %v489
      %545 = vmatprep.subr.bf16.mxu0 0
      %546 = vmatpush1.bf16.msra.mxu0 0
      %547 = vmatprep.subr.bf16.mxu0 0
      %548 = vmatpush1.bf16.msra.mxu0 0
      %549 = vmatprep.subr.bf16.mxu0 0
      %550 = vmatpush1.bf16.msra.mxu0 0
      %551 = vmatprep.subr.bf16.mxu0 0
      %552 = vmatpush1.bf16.msra.mxu0 0
      %553 = vmatprep.subr.bf16.mxu0 0
      %554 = vmatpush1.bf16.msra.mxu0 0
      %555 = vmatprep.subr.bf16.mxu0 0
      %556 = vmatpush1.bf16.msra.mxu0 0
      %557 = vmatprep.subr.bf16.mxu0 0
      %558 = vmatpush1.bf16.msra.mxu0 0
      %559 = vmatprep.subr.bf16.mxu0 0
      %560 = vmatpush1.bf16.msra.mxu0 0
      %561 = vmatprep.subr.bf16.mxu0 0
      %562 = vmatpush1.bf16.msra.mxu0 0
      %563 = vmatprep.subr.bf16.mxu0 0
      %564 = vmatpush1.bf16.msra.mxu0 0
      %565 = vmatprep.subr.bf16.mxu0 0
      %566 = vmatpush1.bf16.msra.mxu0 0
      %567 = vmatprep.subr.bf16.mxu0 0
      %568 = vmatpush1.bf16.msra.mxu0 0
      %569 = vmatprep.subr.bf16.mxu0 0
      %570 = vmatpush1.bf16.msra.mxu0 0
      %571 = vmatprep.subr.bf16.mxu0 0
      %572 = vmatpush1.bf16.msra.mxu0 0
      %573 = vmatprep.mubr.bf16.mxu0 0
      %574 = vmatmul.mubr.bf16.gmra.mrb[0].mxu0 %v494
      %v575 = vpop.f32.mrb[0].mxu0
      %v576 = vadd.f32 %v398, %v575
      %v577 = vpop.f32.mrb[0].mxu0
      %v578 = vpop.f32.mrb[0].mxu0
      %v579 = vadd.f32 %v398, %v578
      %v580 = vpop.f32.mrb[0].mxu0
      %581 = vmatprep.mubr.bf16.mxu0 0
      %582 = vmatmul.mubr.bf16.gmra.mrb[0].mxu0 %v497
      %v583 = vpop.f32.mrb[0].mxu0
      %v584 = vadd.f32 %v398, %v583
      %v585 = vpop.f32.mrb[0].mxu0
      %v586 = vpop.f32.mrb[0].mxu0
      %v587 = vadd.f32 %v398, %v586
      %v588 = vpop.f32.mrb[0].mxu0
      %589 = vmatprep.mubr.bf16.mxu0 0
      %590 = vmatmul.mubr.bf16.gmra.mrb[0].mxu0 %v500
      %v591 = vpop.f32.mrb[0].mxu0
      %v592 = vadd.f32 %v398, %v591
      %v593 = vpop.f32.mrb[0].mxu0
      %v594 = vpop.f32.mrb[0].mxu0
      %v595 = vadd.f32 %v398, %v594
      %v596 = vpop.f32.mrb[0].mxu0
      %597 = vmatprep.mubr.bf16.mxu0 0
      %598 = vmatmul.mubr.bf16.gmra.mrb[0].mxu0 %v503
      %v599 = vpop.f32.mrb[0].mxu0
      %v600 = vadd.f32 %v398, %v599
      %v601 = vpop.f32.mrb[0].mxu0
      %v602 = vpop.f32.mrb[0].mxu0
      %v603 = vadd.f32 %v398, %v602
      %v604 = vpop.f32.mrb[0].mxu0
      %605 = vmatprep.mubr.bf16.mxu0 0
      %606 = vmatmul.mubr.bf16.gmra.mrb[0].mxu0 %v506
      %v607 = vpop.f32.mrb[0].mxu0
      %v608 = vadd.f32 %v398, %v607
      %v609 = vpop.f32.mrb[0].mxu0
      %v610 = vpop.f32.mrb[0].mxu0
      %v611 = vadd.f32 %v398, %v610
      %v612 = vpop.f32.mrb[0].mxu0
      %613 = vmatprep.mubr.bf16.mxu0 0
      %614 = vmatmul.mubr.bf16.gmra.mrb[0].mxu0 %v509
      %v615 = vpop.f32.mrb[0].mxu0
      %v616 = vadd.f32 %v398, %v615
      %v617 = vpop.f32.mrb[0].mxu0
      %v618 = vpop.f32.mrb[0].mxu0
      %v619 = vadd.f32 %v398, %v618
      %v620 = vpop.f32.mrb[0].mxu0
      %621 = vmatprep.mubr.bf16.mxu0 0
      %622 = vmatmul.mubr.bf16.gmra.mrb[0].mxu0 %v512
      %v623 = vpop.f32.mrb[0].mxu0
      %v624 = vadd.f32 %v398, %v623
      %v625 = vpop.f32.mrb[0].mxu0
      %v626 = vpop.f32.mrb[0].mxu0
      %v627 = vadd.f32 %v398, %v626
      %v628 = vpop.f32.mrb[0].mxu0
      %629 = vmatprep.mubr.bf16.mxu0 0
      %630 = vmatmul.mubr.bf16.gmra.mrb[0].mxu0 %v515
      %v631 = vpop.f32.mrb[0].mxu0
      %v632 = vadd.f32 %v398, %v631
      %v633 = vpop.f32.mrb[0].mxu0
      %v634 = vpop.f32.mrb[0].mxu0
      %v635 = vadd.f32 %v398, %v634
      %v636 = vpop.f32.mrb[0].mxu0
      %637 = vmatprep.mubr.bf16.mxu0 0
      %638 = vmatmul.mubr.bf16.gmra.mrb[0].mxu0 %v518
      %v639 = vpop.f32.mrb[0].mxu0
      %v640 = vadd.f32 %v398, %v639
      %v641 = vpop.f32.mrb[0].mxu0
      %v642 = vpop.f32.mrb[0].mxu0
      %v643 = vadd.f32 %v398, %v642
      %v644 = vpop.f32.mrb[0].mxu0
      %645 = vmatprep.mubr.bf16.mxu0 0
      %646 = vmatmul.mubr.bf16.gmra.mrb[0].mxu0 %v521
      %v647 = vpop.f32.mrb[0].mxu0
      %v648 = vadd.f32 %v398, %v647
      %v649 = vpop.f32.mrb[0].mxu0
      %v650 = vpop.f32.mrb[0].mxu0
      %v651 = vadd.f32 %v398, %v650
      %v652 = vpop.f32.mrb[0].mxu0
      %653 = vmatprep.mubr.bf16.mxu0 0
      %654 = vmatmul.mubr.bf16.gmra.mrb[0].mxu0 %v524
      %v655 = vpop.f32.mrb[0].mxu0
      %v656 = vadd.f32 %v398, %v655
      %v657 = vpop.f32.mrb[0].mxu0
      %v658 = vpop.f32.mrb[0].mxu0
      %v659 = vadd.f32 %v398, %v658
      %v660 = vpop.f32.mrb[0].mxu0
      %661 = vmatprep.mubr.bf16.mxu0 0
      %662 = vmatmul.mubr.bf16.gmra.mrb[0].mxu0 %v527
      %v663 = vpop.f32.mrb[0].mxu0
      %v664 = vadd.f32 %v398, %v663
      %v665 = vpop.f32.mrb[0].mxu0
      %v666 = vpop.f32.mrb[0].mxu0
      %v667 = vadd.f32 %v398, %v666
      %v668 = vpop.f32.mrb[0].mxu0
      %669 = vmatprep.mubr.bf16.mxu0 0
      %670 = vmatmul.mubr.bf16.gmra.mrb[0].mxu0 %v530
      %v671 = vpop.f32.mrb[0].mxu0
      %v672 = vadd.f32 %v398, %v671
      %v673 = vpop.f32.mrb[0].mxu0
      %v674 = vpop.f32.mrb[0].mxu0
      %v675 = vadd.f32 %v398, %v674
      %v676 = vpop.f32.mrb[0].mxu0
      %677 = vmatprep.mubr.bf16.mxu0 0
      %678 = vmatmul.mubr.bf16.gmra.mrb[0].mxu0 %v533
      %v679 = vpop.f32.mrb[0].mxu0
      %v680 = vadd.f32 %v398, %v679
      %v681 = vpop.f32.mrb[0].mxu0
      %v682 = vpop.f32.mrb[0].mxu0
      %v683 = vadd.f32 %v398, %v682
      %v684 = vpop.f32.mrb[0].mxu0
      %685 = vmatprep.mubr.bf16.mxu0 0
      %686 = vmatmul.mubr.bf16.gmra.mrb[0].mxu0 %v536
      %v687 = vpop.f32.mrb[0].mxu0
      %v688 = vadd.f32 %v398, %v687
      %v689 = vpop.f32.mrb[0].mxu0
      %v690 = vpop.f32.mrb[0].mxu0
      %v691 = vadd.f32 %v398, %v690
      %v692 = vpop.f32.mrb[0].mxu0
      %693 = vmatprep.mubr.bf16.mxu0 0
      %694 = vmatmul.mubr.bf16.gmra.mrb[0].mxu0 %v539
      %v695 = vpop.f32.mrb[0].mxu0
      %v696 = vadd.f32 %v398, %v695
      %v697 = vpop.f32.mrb[0].mxu0
      %v698 = vpop.f32.mrb[0].mxu0
      %v699 = vadd.f32 %v398, %v698
      %v700 = vpop.f32.mrb[0].mxu0
      %701 = vdwg.mxu0
      %v702 = vtanh.pop %v576
      %v703 = vtanh.pop %v579
      %v704 = vtanh.pop %v584
      %v705 = vtanh.pop %v587
      %v706 = vtanh.pop %v592
      %v707 = vtanh.pop %v595
      %v708 = vtanh.pop %v600
      %v709 = vtanh.pop %v603
      %v710 = vtanh.pop %v608
      %v711 = vtanh.pop %v611
      %v712 = vtanh.pop %v616
      %v713 = vtanh.pop %v619
      %v714 = vtanh.pop %v624
      %v715 = vtanh.pop %v627
      %v716 = vtanh.pop %v632
      %v717 = vtanh.pop %v635
      %v718 = vtanh.pop %v640
      %v719 = vtanh.pop %v643
      %v720 = vtanh.pop %v648
      %v721 = vtanh.pop %v651
      %v722 = vtanh.pop %v656
      %v723 = vtanh.pop %v659
      %v724 = vtanh.pop %v664
      %v725 = vtanh.pop %v667
      %v726 = vtanh.pop %v672
      %v727 = vtanh.pop %v675
      %v728 = vtanh.pop %v680
      %v729 = vtanh.pop %v683
      %v730 = vtanh.pop %v688
      %v731 = vtanh.pop %v691
      %v732 = vtanh.pop %v696
      %v733 = vtanh.pop %v699
      %v734 = vld [vmem:[%s3] sm:$0x1]
      %v736 = vlaneseq
      %v737 = vshrl.u32 %v736, 7
      %v738 = vsub.s32 0, %v737
      %v739 = vrot.slane %v734, %v738
      %v741 = vmul.f32 %v702, %v739
      %v742 = vmul.f32 %v703, %v739
      %v743 = vmul.f32 %v704, %v739
      %v744 = vmul.f32 %v705, %v739
      %v745 = vmul.f32 %v706, %v739
      %v746 = vmul.f32 %v707, %v739
      %v747 = vmul.f32 %v708, %v739
      %v748 = vmul.f32 %v709, %v739
      %v749 = vmul.f32 %v710, %v739
      %v750 = vmul.f32 %v711, %v739
      %v751 = vmul.f32 %v712, %v739
      %v752 = vmul.f32 %v713, %v739
      %v753 = vmul.f32 %v714, %v739
      %v754 = vmul.f32 %v715, %v739
      %v755 = vmul.f32 %v716, %v739
      %v756 = vmul.f32 %v717, %v739
      %v757 = vmul.f32 %v718, %v739
      %v758 = vmul.f32 %v719, %v739
      %v759 = vmul.f32 %v720, %v739
      %v760 = vmul.f32 %v721, %v739
      %v761 = vmul.f32 %v722, %v739
      %v762 = vmul.f32 %v723, %v739
      %v763 = vmul.f32 %v724, %v739
      %v764 = vmul.f32 %v725, %v739
      %v765 = vmul.f32 %v726, %v739
      %v766 = vmul.f32 %v727, %v739
      %v767 = vmul.f32 %v728, %v739
      %v768 = vmul.f32 %v729, %v739
      %v769 = vmul.f32 %v730, %v739
      %v770 = vmul.f32 %v731, %v739
      %v771 = vmul.f32 %v732, %v739
      %v772 = vmul.f32 %v733, %v739
      %vm773 = vcmask 130048
      %v774 = vsel %vm773, %v741, 0.0
      %775 = vadd.xlane.f32.xlu0 %v774
      %v776 = vpop.xlane.xlu0 %775
      %v777 = vsel %vm773, %v742, 0.0
      %778 = vadd.xlane.f32.xlu0 %v777
      %v779 = vpop.xlane.xlu0 %778
      %v780 = vsel %vm773, %v743, 0.0
      %781 = vadd.xlane.f32.xlu0 %v780
      %v782 = vpop.xlane.xlu0 %781
      %v783 = vsel %vm773, %v744, 0.0
      %784 = vadd.xlane.f32.xlu0 %v783
      %v785 = vpop.xlane.xlu0 %784
      %v786 = vsel %vm773, %v745, 0.0
      %787 = vadd.xlane.f32.xlu0 %v786
      %v788 = vpop.xlane.xlu0 %787
      %v789 = vsel %vm773, %v746, 0.0
      %790 = vadd.xlane.f32.xlu0 %v789
      %v791 = vpop.xlane.xlu0 %790
      %v792 = vsel %vm773, %v747, 0.0
      %793 = vadd.xlane.f32.xlu0 %v792
      %v794 = vpop.xlane.xlu0 %793
      %v795 = vsel %vm773, %v748, 0.0
      %796 = vadd.xlane.f32.xlu0 %v795
      %v797 = vpop.xlane.xlu0 %796
      %v798 = vsel %vm773, %v749, 0.0
      %799 = vadd.xlane.f32.xlu0 %v798
      %v800 = vpop.xlane.xlu0 %799
      %v801 = vsel %vm773, %v750, 0.0
      %802 = vadd.xlane.f32.xlu0 %v801
      %v803 = vpop.xlane.xlu0 %802
      %v804 = vsel %vm773, %v751, 0.0
      %805 = vadd.xlane.f32.xlu0 %v804
      %v806 = vpop.xlane.xlu0 %805
      %v807 = vsel %vm773, %v752, 0.0
      %808 = vadd.xlane.f32.xlu0 %v807
      %v809 = vpop.xlane.xlu0 %808
      %v810 = vsel %vm773, %v753, 0.0
      %811 = vadd.xlane.f32.xlu0 %v810
      %v812 = vpop.xlane.xlu0 %811
      %v813 = vsel %vm773, %v754, 0.0
      %814 = vadd.xlane.f32.xlu0 %v813
      %v815 = vpop.xlane.xlu0 %814
      %v816 = vsel %vm773, %v755, 0.0
      %817 = vadd.xlane.f32.xlu0 %v816
      %v818 = vpop.xlane.xlu0 %817
      %v819 = vsel %vm773, %v756, 0.0
      %820 = vadd.xlane.f32.xlu0 %v819
      %v821 = vpop.xlane.xlu0 %820
      %v822 = vsel %vm773, %v757, 0.0
      %823 = vadd.xlane.f32.xlu0 %v822
      %v824 = vpop.xlane.xlu0 %823
      %v825 = vsel %vm773, %v758, 0.0
      %826 = vadd.xlane.f32.xlu0 %v825
      %v827 = vpop.xlane.xlu0 %826
      %v828 = vsel %vm773, %v759, 0.0
      %829 = vadd.xlane.f32.xlu0 %v828
      %v830 = vpop.xlane.xlu0 %829
      %v831 = vsel %vm773, %v760, 0.0
      %832 = vadd.xlane.f32.xlu0 %v831
      %v833 = vpop.xlane.xlu0 %832
      %v834 = vsel %vm773, %v761, 0.0
      %835 = vadd.xlane.f32.xlu0 %v834
      %v836 = vpop.xlane.xlu0 %835
      %v837 = vsel %vm773, %v762, 0.0
      %838 = vadd.xlane.f32.xlu0 %v837
      %v839 = vpop.xlane.xlu0 %838
      %v840 = vsel %vm773, %v763, 0.0
      %841 = vadd.xlane.f32.xlu0 %v840
      %v842 = vpop.xlane.xlu0 %841
      %v843 = vsel %vm773, %v764, 0.0
      %844 = vadd.xlane.f32.xlu0 %v843
      %v845 = vpop.xlane.xlu0 %844
      %v846 = vsel %vm773, %v765, 0.0
      %847 = vadd.xlane.f32.xlu0 %v846
      %v848 = vpop.xlane.xlu0 %847
      %v849 = vsel %vm773, %v766, 0.0
      %850 = vadd.xlane.f32.xlu0 %v849
      %v851 = vpop.xlane.xlu0 %850
      %v852 = vsel %vm773, %v767, 0.0
      %853 = vadd.xlane.f32.xlu0 %v852
      %v854 = vpop.xlane.xlu0 %853
      %v855 = vsel %vm773, %v768, 0.0
      %856 = vadd.xlane.f32.xlu0 %v855
      %v857 = vpop.xlane.xlu0 %856
      %v858 = vsel %vm773, %v769, 0.0
      %859 = vadd.xlane.f32.xlu0 %v858
      %v860 = vpop.xlane.xlu0 %859
      %v861 = vsel %vm773, %v770, 0.0
      %862 = vadd.xlane.f32.xlu0 %v861
      %v863 = vpop.xlane.xlu0 %862
      %v864 = vsel %vm773, %v771, 0.0
      %865 = vadd.xlane.f32.xlu0 %v864
      %v866 = vpop.xlane.xlu0 %865
      %v867 = vsel %vm773, %v772, 0.0
      %868 = vadd.xlane.f32.xlu0 %v867
      %v869 = vpop.xlane.xlu0 %868
      %s870 = sld [smem:[#allocation2]]
      %v871 = vstv %s870
      %v872 = vadd.f32 %v776, %v871
      %v873 = vadd.f32 %v779, %v871
      %v874 = vadd.f32 %v782, %v871
      %v875 = vadd.f32 %v785, %v871
      %v876 = vadd.f32 %v788, %v871
      %v877 = vadd.f32 %v791, %v871
      %v878 = vadd.f32 %v794, %v871
      %v879 = vadd.f32 %v797, %v871
      %v880 = vadd.f32 %v800, %v871
      %v881 = vadd.f32 %v803, %v871
      %v882 = vadd.f32 %v806, %v871
      %v883 = vadd.f32 %v809, %v871
      %v884 = vadd.f32 %v812, %v871
      %v885 = vadd.f32 %v815, %v871
      %v886 = vadd.f32 %v818, %v871
      %v887 = vadd.f32 %v821, %v871
      %v888 = vadd.f32 %v824, %v871
      %v889 = vadd.f32 %v827, %v871
      %v890 = vadd.f32 %v830, %v871
      %v891 = vadd.f32 %v833, %v871
      %v892 = vadd.f32 %v836, %v871
      %v893 = vadd.f32 %v839, %v871
      %v894 = vadd.f32 %v842, %v871
      %v895 = vadd.f32 %v845, %v871
      %v896 = vadd.f32 %v848, %v871
      %v897 = vadd.f32 %v851, %v871
      %v898 = vadd.f32 %v854, %v871
      %v899 = vadd.f32 %v857, %v871
      %v900 = vadd.f32 %v860, %v871
      %v901 = vadd.f32 %v863, %v871
      %v902 = vadd.f32 %v866, %v871
      %v903 = vadd.f32 %v869, %v871
      %v904 = vmax.f32 %v872, %v873
      %v905 = vrot.slane %v904, 4
      %v906 = vmax.f32 %v904, %v905
      %v907 = vrot.slane %v906, 2
      %v908 = vmax.f32 %v906, %v907
      %v909 = vrot.slane %v908, 1
      %v910 = vmax.f32 %v908, %v909
      %v911 = vmax.f32 %v874, %v875
      %v912 = vrot.slane %v911, 4
      %v913 = vmax.f32 %v911, %v912
      %v914 = vrot.slane %v913, 2
      %v915 = vmax.f32 %v913, %v914
      %v916 = vrot.slane %v915, 1
      %v917 = vmax.f32 %v915, %v916
      %v918 = vmax.f32 %v876, %v877
      %v919 = vrot.slane %v918, 4
      %v920 = vmax.f32 %v918, %v919
      %v921 = vrot.slane %v920, 2
      %v922 = vmax.f32 %v920, %v921
      %v923 = vrot.slane %v922, 1
      %v924 = vmax.f32 %v922, %v923
      %v925 = vmax.f32 %v878, %v879
      %v926 = vrot.slane %v925, 4
      %v927 = vmax.f32 %v925, %v926
      %v928 = vrot.slane %v927, 2
      %v929 = vmax.f32 %v927, %v928
      %v930 = vrot.slane %v929, 1
      %v931 = vmax.f32 %v929, %v930
      %v932 = vmax.f32 %v880, %v881
      %v933 = vrot.slane %v932, 4
      %v934 = vmax.f32 %v932, %v933
      %v935 = vrot.slane %v934, 2
      %v936 = vmax.f32 %v934, %v935
      %v937 = vrot.slane %v936, 1
      %v938 = vmax.f32 %v936, %v937
      %v939 = vmax.f32 %v882, %v883
      %v940 = vrot.slane %v939, 4
      %v941 = vmax.f32 %v939, %v940
      %v942 = vrot.slane %v941, 2
      %v943 = vmax.f32 %v941, %v942
      %v944 = vrot.slane %v943, 1
      %v945 = vmax.f32 %v943, %v944
      %v946 = vmax.f32 %v884, %v885
      %v947 = vrot.slane %v946, 4
      %v948 = vmax.f32 %v946, %v947
      %v949 = vrot.slane %v948, 2
      %v950 = vmax.f32 %v948, %v949
      %v951 = vrot.slane %v950, 1
      %v952 = vmax.f32 %v950, %v951
      %v953 = vmax.f32 %v886, %v887
      %v954 = vrot.slane %v953, 4
      %v955 = vmax.f32 %v953, %v954
      %v956 = vrot.slane %v955, 2
      %v957 = vmax.f32 %v955, %v956
      %v958 = vrot.slane %v957, 1
      %v959 = vmax.f32 %v957, %v958
      %v960 = vmax.f32 %v888, %v889
      %v961 = vrot.slane %v960, 4
      %v962 = vmax.f32 %v960, %v961
      %v963 = vrot.slane %v962, 2
      %v964 = vmax.f32 %v962, %v963
      %v965 = vrot.slane %v964, 1
      %v966 = vmax.f32 %v964, %v965
      %v967 = vmax.f32 %v890, %v891
      %v968 = vrot.slane %v967, 4
      %v969 = vmax.f32 %v967, %v968
      %v970 = vrot.slane %v969, 2
      %v971 = vmax.f32 %v969, %v970
      %v972 = vrot.slane %v971, 1
      %v973 = vmax.f32 %v971, %v972
      %v974 = vmax.f32 %v892, %v893
      %v975 = vrot.slane %v974, 4
      %v976 = vmax.f32 %v974, %v975
      %v977 = vrot.slane %v976, 2
      %v978 = vmax.f32 %v976, %v977
      %v979 = vrot.slane %v978, 1
      %v980 = vmax.f32 %v978, %v979
      %v981 = vmax.f32 %v894, %v895
      %v982 = vrot.slane %v981, 4
      %v983 = vmax.f32 %v981, %v982
      %v984 = vrot.slane %v983, 2
      %v985 = vmax.f32 %v983, %v984
      %v986 = vrot.slane %v985, 1
      %v987 = vmax.f32 %v985, %v986
      %v988 = vmax.f32 %v896, %v897
      %v989 = vrot.slane %v988, 4
      %v990 = vmax.f32 %v988, %v989
      %v991 = vrot.slane %v990, 2
      %v992 = vmax.f32 %v990, %v991
      %v993 = vrot.slane %v992, 1
      %v994 = vmax.f32 %v992, %v993
      %v995 = vmax.f32 %v898, %v899
      %v996 = vrot.slane %v995, 4
      %v997 = vmax.f32 %v995, %v996
      %v998 = vrot.slane %v997, 2
      %v999 = vmax.f32 %v997, %v998
      %v1000 = vrot.slane %v999, 1
      %v1001 = vmax.f32 %v999, %v1000
      %v1002 = vmax.f32 %v900, %v901
      %v1003 = vrot.slane %v1002, 4
      %v1004 = vmax.f32 %v1002, %v1003
      %v1005 = vrot.slane %v1004, 2
      %v1006 = vmax.f32 %v1004, %v1005
      %v1007 = vrot.slane %v1006, 1
      %v1008 = vmax.f32 %v1006, %v1007
      %v1009 = vmax.f32 %v902, %v903
      %v1010 = vrot.slane %v1009, 4
      %v1011 = vmax.f32 %v1009, %v1010
      %v1012 = vrot.slane %v1011, 2
      %v1013 = vmax.f32 %v1011, %v1012
      %v1014 = vrot.slane %v1013, 1
      %v1015 = vmax.f32 %v1013, %v1014
      %v1016 = vsub.f32 %v872, %v910
      %v1017 = vsub.f32 %v873, %v910
      %v1018 = vsub.f32 %v874, %v917
      %v1019 = vsub.f32 %v875, %v917
      %v1020 = vsub.f32 %v876, %v924
      %v1021 = vsub.f32 %v877, %v924
      %v1022 = vsub.f32 %v878, %v931
      %v1023 = vsub.f32 %v879, %v931
      %v1024 = vsub.f32 %v880, %v938
      %v1025 = vsub.f32 %v881, %v938
      %v1026 = vsub.f32 %v882, %v945
      %v1027 = vsub.f32 %v883, %v945
      %v1028 = vsub.f32 %v884, %v952
      %v1029 = vsub.f32 %v885, %v952
      %v1030 = vsub.f32 %v886, %v959
      %v1031 = vsub.f32 %v887, %v959
      %v1032 = vsub.f32 %v888, %v966
      %v1033 = vsub.f32 %v889, %v966
      %v1034 = vsub.f32 %v890, %v973
      %v1035 = vsub.f32 %v891, %v973
      %v1036 = vsub.f32 %v892, %v980
      %v1037 = vsub.f32 %v893, %v980
      %v1038 = vsub.f32 %v894, %v987
      %v1039 = vsub.f32 %v895, %v987
      %v1040 = vsub.f32 %v896, %v994
      %v1041 = vsub.f32 %v897, %v994
      %v1042 = vsub.f32 %v898, %v1001
      %v1043 = vsub.f32 %v899, %v1001
      %v1044 = vsub.f32 %v900, %v1008
      %v1045 = vsub.f32 %v901, %v1008
      %v1046 = vsub.f32 %v902, %v1015
      %v1047 = vsub.f32 %v903, %v1015
      %v1048 = vmul.f32 %v1016, 1.442695
      %v1049 = vpow.pop %v1048
      %v1050 = vmul.f32 %v1017, 1.442695
      %v1051 = vpow.pop %v1050
      %v1052 = vmul.f32 %v1018, 1.442695
      %v1053 = vpow.pop %v1052
      %v1054 = vmul.f32 %v1019, 1.442695
      %v1055 = vpow.pop %v1054
      %v1056 = vmul.f32 %v1020, 1.442695
      %v1057 = vpow.pop %v1056
      %v1058 = vmul.f32 %v1021, 1.442695
      %v1059 = vpow.pop %v1058
      %v1060 = vmul.f32 %v1022, 1.442695
      %v1061 = vpow.pop %v1060
      %v1062 = vmul.f32 %v1023, 1.442695
      %v1063 = vpow.pop %v1062
      %v1064 = vmul.f32 %v1024, 1.442695
      %v1065 = vpow.pop %v1064
      %v1066 = vmul.f32 %v1025, 1.442695
      %v1067 = vpow.pop %v1066
      %v1068 = vmul.f32 %v1026, 1.442695
      %v1069 = vpow.pop %v1068
      %v1070 = vmul.f32 %v1027, 1.442695
      %v1071 = vpow.pop %v1070
      %v1072 = vmul.f32 %v1028, 1.442695
      %v1073 = vpow.pop %v1072
      %v1074 = vmul.f32 %v1029, 1.442695
      %v1075 = vpow.pop %v1074
      %v1076 = vmul.f32 %v1030, 1.442695
      %v1077 = vpow.pop %v1076
      %v1078 = vmul.f32 %v1031, 1.442695
      %v1079 = vpow.pop %v1078
      %v1080 = vmul.f32 %v1032, 1.442695
      %v1081 = vpow.pop %v1080
      %v1082 = vmul.f32 %v1033, 1.442695
      %v1083 = vpow.pop %v1082
      %v1084 = vmul.f32 %v1034, 1.442695
      %v1085 = vpow.pop %v1084
      %v1086 = vmul.f32 %v1035, 1.442695
      %v1087 = vpow.pop %v1086
      %v1088 = vmul.f32 %v1036, 1.442695
      %v1089 = vpow.pop %v1088
      %v1090 = vmul.f32 %v1037, 1.442695
      %v1091 = vpow.pop %v1090
      %v1092 = vmul.f32 %v1038, 1.442695
      %v1093 = vpow.pop %v1092
      %v1094 = vmul.f32 %v1039, 1.442695
      %v1095 = vpow.pop %v1094
      %v1096 = vmul.f32 %v1040, 1.442695
      %v1097 = vpow.pop %v1096
      %v1098 = vmul.f32 %v1041, 1.442695
      %v1099 = vpow.pop %v1098
      %v1100 = vmul.f32 %v1042, 1.442695
      %v1101 = vpow.pop %v1100
      %v1102 = vmul.f32 %v1043, 1.442695
      %v1103 = vpow.pop %v1102
      %v1104 = vmul.f32 %v1044, 1.442695
      %v1105 = vpow.pop %v1104
      %v1106 = vmul.f32 %v1045, 1.442695
      %v1107 = vpow.pop %v1106
      %v1108 = vmul.f32 %v1046, 1.442695
      %v1109 = vpow.pop %v1108
      %v1110 = vmul.f32 %v1047, 1.442695
      %v1111 = vpow.pop %v1110
      %v1112 = vadd.f32 %v1049, %v1051
      %v1113 = vrot.slane %v1112, 4
      %v1114 = vadd.f32 %v1112, %v1113
      %v1115 = vrot.slane %v1114, 2
      %v1116 = vadd.f32 %v1114, %v1115
      %v1117 = vrot.slane %v1116, 1
      %v1118 = vadd.f32 %v1116, %v1117
      %v1119 = vadd.f32 %v1053, %v1055
      %v1120 = vrot.slane %v1119, 4
      %v1121 = vadd.f32 %v1119, %v1120
      %v1122 = vrot.slane %v1121, 2
      %v1123 = vadd.f32 %v1121, %v1122
      %v1124 = vrot.slane %v1123, 1
      %v1125 = vadd.f32 %v1123, %v1124
      %v1126 = vadd.f32 %v1057, %v1059
      %v1127 = vrot.slane %v1126, 4
      %v1128 = vadd.f32 %v1126, %v1127
      %v1129 = vrot.slane %v1128, 2
      %v1130 = vadd.f32 %v1128, %v1129
      %v1131 = vrot.slane %v1130, 1
      %v1132 = vadd.f32 %v1130, %v1131
      %v1133 = vadd.f32 %v1061, %v1063
      %v1134 = vrot.slane %v1133, 4
      %v1135 = vadd.f32 %v1133, %v1134
      %v1136 = vrot.slane %v1135, 2
      %v1137 = vadd.f32 %v1135, %v1136
      %v1138 = vrot.slane %v1137, 1
      %v1139 = vadd.f32 %v1137, %v1138
      %v1140 = vadd.f32 %v1065, %v1067
      %v1141 = vrot.slane %v1140, 4
      %v1142 = vadd.f32 %v1140, %v1141
      %v1143 = vrot.slane %v1142, 2
      %v1144 = vadd.f32 %v1142, %v1143
      %v1145 = vrot.slane %v1144, 1
      %v1146 = vadd.f32 %v1144, %v1145
      %v1147 = vadd.f32 %v1069, %v1071
      %v1148 = vrot.slane %v1147, 4
      %v1149 = vadd.f32 %v1147, %v1148
      %v1150 = vrot.slane %v1149, 2
      %v1151 = vadd.f32 %v1149, %v1150
      %v1152 = vrot.slane %v1151, 1
      %v1153 = vadd.f32 %v1151, %v1152
      %v1154 = vadd.f32 %v1073, %v1075
      %v1155 = vrot.slane %v1154, 4
      %v1156 = vadd.f32 %v1154, %v1155
      %v1157 = vrot.slane %v1156, 2
      %v1158 = vadd.f32 %v1156, %v1157
      %v1159 = vrot.slane %v1158, 1
      %v1160 = vadd.f32 %v1158, %v1159
      %v1161 = vadd.f32 %v1077, %v1079
      %v1162 = vrot.slane %v1161, 4
      %v1163 = vadd.f32 %v1161, %v1162
      %v1164 = vrot.slane %v1163, 2
      %v1165 = vadd.f32 %v1163, %v1164
      %v1166 = vrot.slane %v1165, 1
      %v1167 = vadd.f32 %v1165, %v1166
      %v1168 = vadd.f32 %v1081, %v1083
      %v1169 = vrot.slane %v1168, 4
      %v1170 = vadd.f32 %v1168, %v1169
      %v1171 = vrot.slane %v1170, 2
      %v1172 = vadd.f32 %v1170, %v1171
      %v1173 = vrot.slane %v1172, 1
      %v1174 = vadd.f32 %v1172, %v1173
      %v1175 = vadd.f32 %v1085, %v1087
      %v1176 = vrot.slane %v1175, 4
      %v1177 = vadd.f32 %v1175, %v1176
      %v1178 = vrot.slane %v1177, 2
      %v1179 = vadd.f32 %v1177, %v1178
      %v1180 = vrot.slane %v1179, 1
      %v1181 = vadd.f32 %v1179, %v1180
      %v1182 = vadd.f32 %v1089, %v1091
      %v1183 = vrot.slane %v1182, 4
      %v1184 = vadd.f32 %v1182, %v1183
      %v1185 = vrot.slane %v1184, 2
      %v1186 = vadd.f32 %v1184, %v1185
      %v1187 = vrot.slane %v1186, 1
      %v1188 = vadd.f32 %v1186, %v1187
      %v1189 = vadd.f32 %v1093, %v1095
      %v1190 = vrot.slane %v1189, 4
      %v1191 = vadd.f32 %v1189, %v1190
      %v1192 = vrot.slane %v1191, 2
      %v1193 = vadd.f32 %v1191, %v1192
      %v1194 = vrot.slane %v1193, 1
      %v1195 = vadd.f32 %v1193, %v1194
      %v1196 = vadd.f32 %v1097, %v1099
      %v1197 = vrot.slane %v1196, 4
      %v1198 = vadd.f32 %v1196, %v1197
      %v1199 = vrot.slane %v1198, 2
      %v1200 = vadd.f32 %v1198, %v1199
      %v1201 = vrot.slane %v1200, 1
      %v1202 = vadd.f32 %v1200, %v1201
      %v1203 = vadd.f32 %v1101, %v1103
      %v1204 = vrot.slane %v1203, 4
      %v1205 = vadd.f32 %v1203, %v1204
      %v1206 = vrot.slane %v1205, 2
      %v1207 = vadd.f32 %v1205, %v1206
      %v1208 = vrot.slane %v1207, 1
      %v1209 = vadd.f32 %v1207, %v1208
      %v1210 = vadd.f32 %v1105, %v1107
      %v1211 = vrot.slane %v1210, 4
      %v1212 = vadd.f32 %v1210, %v1211
      %v1213 = vrot.slane %v1212, 2
      %v1214 = vadd.f32 %v1212, %v1213
      %v1215 = vrot.slane %v1214, 1
      %v1216 = vadd.f32 %v1214, %v1215
      %v1217 = vadd.f32 %v1109, %v1111
      %v1218 = vrot.slane %v1217, 4
      %v1219 = vadd.f32 %v1217, %v1218
      %v1220 = vrot.slane %v1219, 2
      %v1221 = vadd.f32 %v1219, %v1220
      %v1222 = vrot.slane %v1221, 1
      %v1223 = vadd.f32 %v1221, %v1222
      %v1224 = vrcp.pop %v1118
      %v1225 = vmul.f32 %v1049, %v1224
      %v1226 = vmul.f32 %v1051, %v1224
      %v1227 = vrcp.pop %v1125
      %v1228 = vmul.f32 %v1053, %v1227
      %v1229 = vmul.f32 %v1055, %v1227
      %v1230 = vrcp.pop %v1132
      %v1231 = vmul.f32 %v1057, %v1230
      %v1232 = vmul.f32 %v1059, %v1230
      %v1233 = vrcp.pop %v1139
      %v1234 = vmul.f32 %v1061, %v1233
      %v1235 = vmul.f32 %v1063, %v1233
      %v1236 = vrcp.pop %v1146
      %v1237 = vmul.f32 %v1065, %v1236
      %v1238 = vmul.f32 %v1067, %v1236
      %v1239 = vrcp.pop %v1153
      %v1240 = vmul.f32 %v1069, %v1239
      %v1241 = vmul.f32 %v1071, %v1239
      %v1242 = vrcp.pop %v1160
      %v1243 = vmul.f32 %v1073, %v1242
      %v1244 = vmul.f32 %v1075, %v1242
      %v1245 = vrcp.pop %v1167
      %v1246 = vmul.f32 %v1077, %v1245
      %v1247 = vmul.f32 %v1079, %v1245
      %v1248 = vrcp.pop %v1174
      %v1249 = vmul.f32 %v1081, %v1248
      %v1250 = vmul.f32 %v1083, %v1248
      %v1251 = vrcp.pop %v1181
      %v1252 = vmul.f32 %v1085, %v1251
      %v1253 = vmul.f32 %v1087, %v1251
      %v1254 = vrcp.pop %v1188
      %v1255 = vmul.f32 %v1089, %v1254
      %v1256 = vmul.f32 %v1091, %v1254
      %v1257 = vrcp.pop %v1195
      %v1258 = vmul.f32 %v1093, %v1257
      %v1259 = vmul.f32 %v1095, %v1257
      %v1260 = vrcp.pop %v1202
      %v1261 = vmul.f32 %v1097, %v1260
      %v1262 = vmul.f32 %v1099, %v1260
      %v1263 = vrcp.pop %v1209
      %v1264 = vmul.f32 %v1101, %v1263
      %v1265 = vmul.f32 %v1103, %v1263
      %v1266 = vrcp.pop %v1216
      %v1267 = vmul.f32 %v1105, %v1266
      %v1268 = vmul.f32 %v1107, %v1266
      %v1269 = vrcp.pop %v1223
      %v1270 = vmul.f32 %v1109, %v1269
      %v1271 = vmul.f32 %v1111, %v1269
      %v1272 = vmul.f32 %v1225, %v357
      %v1273 = vmul.f32 %v1226, %v358
      %v1274 = vmul.f32 %v1228, %v359
      %v1275 = vmul.f32 %v1229, %v360
      %v1276 = vmul.f32 %v1231, %v361
      %v1277 = vmul.f32 %v1232, %v362
      %v1278 = vmul.f32 %v1234, %v363
      %v1279 = vmul.f32 %v1235, %v364
      %v1280 = vmul.f32 %v1237, %v365
      %v1281 = vmul.f32 %v1238, %v366
      %v1282 = vmul.f32 %v1240, %v367
      %v1283 = vmul.f32 %v1241, %v368
      %v1284 = vmul.f32 %v1243, %v369
      %v1285 = vmul.f32 %v1244, %v370
      %v1286 = vmul.f32 %v1246, %v371
      %v1287 = vmul.f32 %v1247, %v372
      %v1288 = vmul.f32 %v1249, %v373
      %v1289 = vmul.f32 %v1250, %v374
      %v1290 = vmul.f32 %v1252, %v375
      %v1291 = vmul.f32 %v1253, %v376
      %v1292 = vmul.f32 %v1255, %v377
      %v1293 = vmul.f32 %v1256, %v378
      %v1294 = vmul.f32 %v1258, %v379
      %v1295 = vmul.f32 %v1259, %v380
      %v1296 = vmul.f32 %v1261, %v381
      %v1297 = vmul.f32 %v1262, %v382
      %v1298 = vmul.f32 %v1264, %v383
      %v1299 = vmul.f32 %v1265, %v384
      %v1300 = vmul.f32 %v1267, %v385
      %v1301 = vmul.f32 %v1268, %v386
      %v1302 = vmul.f32 %v1270, %v387
      %v1303 = vmul.f32 %v1271, %v388
      %v1304 = vsel %vm492, %v1272, 0.0
      %v1305 = vsel %vm492, %v1273, 0.0
      %v1306 = vadd.f32 %v1304, %v1305
      %v1307 = vrot.slane %v1306, 4
      %v1308 = vadd.f32 %v1306, %v1307
      %v1309 = vrot.slane %v1308, 2
      %v1310 = vadd.f32 %v1308, %v1309
      %v1311 = vrot.slane %v1310, 1
      %v1312 = vadd.f32 %v1310, %v1311
      %v1313 = vsel %vm492, %v1274, 0.0
      %v1314 = vsel %vm492, %v1275, 0.0
      %v1315 = vadd.f32 %v1313, %v1314
      %v1316 = vrot.slane %v1315, 4
      %v1317 = vadd.f32 %v1315, %v1316
      %v1318 = vrot.slane %v1317, 2
      %v1319 = vadd.f32 %v1317, %v1318
      %v1320 = vrot.slane %v1319, 1
      %v1321 = vadd.f32 %v1319, %v1320
      %v1322 = vsel %vm492, %v1276, 0.0
      %v1323 = vsel %vm492, %v1277, 0.0
      %v1324 = vadd.f32 %v1322, %v1323
      %v1325 = vrot.slane %v1324, 4
      %v1326 = vadd.f32 %v1324, %v1325
      %v1327 = vrot.slane %v1326, 2
      %v1328 = vadd.f32 %v1326, %v1327
      %v1329 = vrot.slane %v1328, 1
      %v1330 = vadd.f32 %v1328, %v1329
      %v1331 = vsel %vm492, %v1278, 0.0
      %v1332 = vsel %vm492, %v1279, 0.0
      %v1333 = vadd.f32 %v1331, %v1332
      %v1334 = vrot.slane %v1333, 4
      %v1335 = vadd.f32 %v1333, %v1334
      %v1336 = vrot.slane %v1335, 2
      %v1337 = vadd.f32 %v1335, %v1336
      %v1338 = vrot.slane %v1337, 1
      %v1339 = vadd.f32 %v1337, %v1338
      %v1340 = vsel %vm492, %v1280, 0.0
      %v1341 = vsel %vm492, %v1281, 0.0
      %v1342 = vadd.f32 %v1340, %v1341
      %v1343 = vrot.slane %v1342, 4
      %v1344 = vadd.f32 %v1342, %v1343
      %v1345 = vrot.slane %v1344, 2
      %v1346 = vadd.f32 %v1344, %v1345
      %v1347 = vrot.slane %v1346, 1
      %v1348 = vadd.f32 %v1346, %v1347
      %v1349 = vsel %vm492, %v1282, 0.0
      %v1350 = vsel %vm492, %v1283, 0.0
      %v1351 = vadd.f32 %v1349, %v1350
      %v1352 = vrot.slane %v1351, 4
      %v1353 = vadd.f32 %v1351, %v1352
      %v1354 = vrot.slane %v1353, 2
      %v1355 = vadd.f32 %v1353, %v1354
      %v1356 = vrot.slane %v1355, 1
      %v1357 = vadd.f32 %v1355, %v1356
      %v1358 = vsel %vm492, %v1284, 0.0
      %v1359 = vsel %vm492, %v1285, 0.0
      %v1360 = vadd.f32 %v1358, %v1359
      %v1361 = vrot.slane %v1360, 4
      %v1362 = vadd.f32 %v1360, %v1361
      %v1363 = vrot.slane %v1362, 2
      %v1364 = vadd.f32 %v1362, %v1363
      %v1365 = vrot.slane %v1364, 1
      %v1366 = vadd.f32 %v1364, %v1365
      %v1367 = vsel %vm492, %v1286, 0.0
      %v1368 = vsel %vm492, %v1287, 0.0
      %v1369 = vadd.f32 %v1367, %v1368
      %v1370 = vrot.slane %v1369, 4
      %v1371 = vadd.f32 %v1369, %v1370
      %v1372 = vrot.slane %v1371, 2
      %v1373 = vadd.f32 %v1371, %v1372
      %v1374 = vrot.slane %v1373, 1
      %v1375 = vadd.f32 %v1373, %v1374
      %v1376 = vsel %vm492, %v1288, 0.0
      %v1377 = vsel %vm492, %v1289, 0.0
      %v1378 = vadd.f32 %v1376, %v1377
      %v1379 = vrot.slane %v1378, 4
      %v1380 = vadd.f32 %v1378, %v1379
      %v1381 = vrot.slane %v1380, 2
      %v1382 = vadd.f32 %v1380, %v1381
      %v1383 = vrot.slane %v1382, 1
      %v1384 = vadd.f32 %v1382, %v1383
      %v1385 = vsel %vm492, %v1290, 0.0
      %v1386 = vsel %vm492, %v1291, 0.0
      %v1387 = vadd.f32 %v1385, %v1386
      %v1388 = vrot.slane %v1387, 4
      %v1389 = vadd.f32 %v1387, %v1388
      %v1390 = vrot.slane %v1389, 2
      %v1391 = vadd.f32 %v1389, %v1390
      %v1392 = vrot.slane %v1391, 1
      %v1393 = vadd.f32 %v1391, %v1392
      %v1394 = vsel %vm492, %v1292, 0.0
      %v1395 = vsel %vm492, %v1293, 0.0
      %v1396 = vadd.f32 %v1394, %v1395
      %v1397 = vrot.slane %v1396, 4
      %v1398 = vadd.f32 %v1396, %v1397
      %v1399 = vrot.slane %v1398, 2
      %v1400 = vadd.f32 %v1398, %v1399
      %v1401 = vrot.slane %v1400, 1
      %v1402 = vadd.f32 %v1400, %v1401
      %v1403 = vsel %vm492, %v1294, 0.0
      %v1404 = vsel %vm492, %v1295, 0.0
      %v1405 = vadd.f32 %v1403, %v1404
      %v1406 = vrot.slane %v1405, 4
      %v1407 = vadd.f32 %v1405, %v1406
      %v1408 = vrot.slane %v1407, 2
      %v1409 = vadd.f32 %v1407, %v1408
      %v1410 = vrot.slane %v1409, 1
      %v1411 = vadd.f32 %v1409, %v1410
      %v1412 = vsel %vm492, %v1296, 0.0
      %v1413 = vsel %vm492, %v1297, 0.0
      %v1414 = vadd.f32 %v1412, %v1413
      %v1415 = vrot.slane %v1414, 4
      %v1416 = vadd.f32 %v1414, %v1415
      %v1417 = vrot.slane %v1416, 2
      %v1418 = vadd.f32 %v1416, %v1417
      %v1419 = vrot.slane %v1418, 1
      %v1420 = vadd.f32 %v1418, %v1419
      %v1421 = vsel %vm492, %v1298, 0.0
      %v1422 = vsel %vm492, %v1299, 0.0
      %v1423 = vadd.f32 %v1421, %v1422
      %v1424 = vrot.slane %v1423, 4
      %v1425 = vadd.f32 %v1423, %v1424
      %v1426 = vrot.slane %v1425, 2
      %v1427 = vadd.f32 %v1425, %v1426
      %v1428 = vrot.slane %v1427, 1
      %v1429 = vadd.f32 %v1427, %v1428
      %v1430 = vsel %vm492, %v1300, 0.0
      %v1431 = vsel %vm492, %v1301, 0.0
      %v1432 = vadd.f32 %v1430, %v1431
      %v1433 = vrot.slane %v1432, 4
      %v1434 = vadd.f32 %v1432, %v1433
      %v1435 = vrot.slane %v1434, 2
      %v1436 = vadd.f32 %v1434, %v1435
      %v1437 = vrot.slane %v1436, 1
      %v1438 = vadd.f32 %v1436, %v1437
      %v1439 = vsel %vm492, %v1302, 0.0
      %v1440 = vsel %vm492, %v1303, 0.0
      %v1441 = vadd.f32 %v1439, %v1440
      %v1442 = vrot.slane %v1441, 4
      %v1443 = vadd.f32 %v1441, %v1442
      %v1444 = vrot.slane %v1443, 2
      %v1445 = vadd.f32 %v1443, %v1444
      %v1446 = vrot.slane %v1445, 1
      %v1447 = vadd.f32 %v1445, %v1446
      %v1448 = vld [vmem:[%s5] sm:$0x1]
      %v1449 = vmul.f32 %v1312, %v1448
      %v1450 = vmul.f32 %v1321, %v1448
      %v1451 = vmul.f32 %v1330, %v1448
      %v1452 = vmul.f32 %v1339, %v1448
      %v1453 = vmul.f32 %v1348, %v1448
      %v1454 = vmul.f32 %v1357, %v1448
      %v1455 = vmul.f32 %v1366, %v1448
      %v1456 = vmul.f32 %v1375, %v1448
      %v1457 = vmul.f32 %v1384, %v1448
      %v1458 = vmul.f32 %v1393, %v1448
      %v1459 = vmul.f32 %v1402, %v1448
      %v1460 = vmul.f32 %v1411, %v1448
      %v1461 = vmul.f32 %v1420, %v1448
      %v1462 = vmul.f32 %v1429, %v1448
      %v1463 = vmul.f32 %v1438, %v1448
      %v1464 = vmul.f32 %v1447, %v1448
      %vm1465 = vcmask 253952
      %v1466 = vsel %vm1465, %v1449, 0.0
      %1467 = vadd.xlane.f32.xlu0 %v1466
      %v1468 = vpop.xlane.xlu0 %1467
      %v1469 = vsel %vm1465, %v1450, 0.0
      %1470 = vadd.xlane.f32.xlu0 %v1469
      %v1471 = vpop.xlane.xlu0 %1470
      %v1472 = vsel %vm1465, %v1451, 0.0
      %1473 = vadd.xlane.f32.xlu0 %v1472
      %v1474 = vpop.xlane.xlu0 %1473
      %v1475 = vsel %vm1465, %v1452, 0.0
      %1476 = vadd.xlane.f32.xlu0 %v1475
      %v1477 = vpop.xlane.xlu0 %1476
      %v1478 = vsel %vm1465, %v1453, 0.0
      %1479 = vadd.xlane.f32.xlu0 %v1478
      %v1480 = vpop.xlane.xlu0 %1479
      %v1481 = vsel %vm1465, %v1454, 0.0
      %1482 = vadd.xlane.f32.xlu0 %v1481
      %v1483 = vpop.xlane.xlu0 %1482
      %v1484 = vsel %vm1465, %v1455, 0.0
      %1485 = vadd.xlane.f32.xlu0 %v1484
      %v1486 = vpop.xlane.xlu0 %1485
      %v1487 = vsel %vm1465, %v1456, 0.0
      %1488 = vadd.xlane.f32.xlu0 %v1487
      %v1489 = vpop.xlane.xlu0 %1488
      %v1490 = vsel %vm1465, %v1457, 0.0
      %1491 = vadd.xlane.f32.xlu0 %v1490
      %v1492 = vpop.xlane.xlu0 %1491
      %v1493 = vsel %vm1465, %v1458, 0.0
      %1494 = vadd.xlane.f32.xlu0 %v1493
      %v1495 = vpop.xlane.xlu0 %1494
      %v1496 = vsel %vm1465, %v1459, 0.0
      %1497 = vadd.xlane.f32.xlu0 %v1496
      %v1498 = vpop.xlane.xlu0 %1497
      %v1499 = vsel %vm1465, %v1460, 0.0
      %1500 = vadd.xlane.f32.xlu0 %v1499
      %v1501 = vpop.xlane.xlu0 %1500
      %v1502 = vsel %vm1465, %v1461, 0.0
      %1503 = vadd.xlane.f32.xlu0 %v1502
      %v1504 = vpop.xlane.xlu0 %1503
      %v1505 = vsel %vm1465, %v1462, 0.0
      %1506 = vadd.xlane.f32.xlu0 %v1505
      %v1507 = vpop.xlane.xlu0 %1506
      %v1508 = vsel %vm1465, %v1463, 0.0
      %1509 = vadd.xlane.f32.xlu0 %v1508
      %v1510 = vpop.xlane.xlu0 %1509
      %v1511 = vsel %vm1465, %v1464, 0.0
      %1512 = vadd.xlane.f32.xlu0 %v1511
      %v1513 = vpop.xlane.xlu0 %1512
      %s1514 = sld [smem:[#allocation3]]
      %v1515 = vstv %s1514
      %v1516 = vadd.f32 %v1468, %v1515
      %v1517 = vadd.f32 %v1471, %v1515
      %v1518 = vadd.f32 %v1474, %v1515
      %v1519 = vadd.f32 %v1477, %v1515
      %v1520 = vadd.f32 %v1480, %v1515
      %v1521 = vadd.f32 %v1483, %v1515
      %v1522 = vadd.f32 %v1486, %v1515
      %v1523 = vadd.f32 %v1489, %v1515
      %v1524 = vadd.f32 %v1492, %v1515
      %v1525 = vadd.f32 %v1495, %v1515
      %v1526 = vadd.f32 %v1498, %v1515
      %v1527 = vadd.f32 %v1501, %v1515
      %v1528 = vadd.f32 %v1504, %v1515
      %v1529 = vadd.f32 %v1507, %v1515
      %v1530 = vadd.f32 %v1510, %v1515
      %v1531 = vadd.f32 %v1513, %v1515
      %v1532 = vxor.u32 %v1516, 2147483648
      %v1533 = vxor.u32 %v1517, 2147483648
      %v1534 = vxor.u32 %v1518, 2147483648
      %v1535 = vxor.u32 %v1519, 2147483648
      %v1536 = vxor.u32 %v1520, 2147483648
      %v1537 = vxor.u32 %v1521, 2147483648
      %v1538 = vxor.u32 %v1522, 2147483648
      %v1539 = vxor.u32 %v1523, 2147483648
      %v1540 = vxor.u32 %v1524, 2147483648
      %v1541 = vxor.u32 %v1525, 2147483648
      %v1542 = vxor.u32 %v1526, 2147483648
      %v1543 = vxor.u32 %v1527, 2147483648
      %v1544 = vxor.u32 %v1528, 2147483648
      %v1545 = vxor.u32 %v1529, 2147483648
      %v1546 = vxor.u32 %v1530, 2147483648
      %v1547 = vxor.u32 %v1531, 2147483648
      %v1548 = vmul.f32 %v1532, 1.442695
      %v1549 = vpow.pop %v1548
      %v1550 = vmul.f32 %v1533, 1.442695
      %v1551 = vpow.pop %v1550
      %v1552 = vmul.f32 %v1534, 1.442695
      %v1553 = vpow.pop %v1552
      %v1554 = vmul.f32 %v1535, 1.442695
      %v1555 = vpow.pop %v1554
      %v1556 = vmul.f32 %v1536, 1.442695
      %v1557 = vpow.pop %v1556
      %v1558 = vmul.f32 %v1537, 1.442695
      %v1559 = vpow.pop %v1558
      %v1560 = vmul.f32 %v1538, 1.442695
      %v1561 = vpow.pop %v1560
      %v1562 = vmul.f32 %v1539, 1.442695
      %v1563 = vpow.pop %v1562
      %v1564 = vmul.f32 %v1540, 1.442695
      %v1565 = vpow.pop %v1564
      %v1566 = vmul.f32 %v1541, 1.442695
      %v1567 = vpow.pop %v1566
      %v1568 = vmul.f32 %v1542, 1.442695
      %v1569 = vpow.pop %v1568
      %v1570 = vmul.f32 %v1543, 1.442695
      %v1571 = vpow.pop %v1570
      %v1572 = vmul.f32 %v1544, 1.442695
      %v1573 = vpow.pop %v1572
      %v1574 = vmul.f32 %v1545, 1.442695
      %v1575 = vpow.pop %v1574
      %v1576 = vmul.f32 %v1546, 1.442695
      %v1577 = vpow.pop %v1576
      %v1578 = vmul.f32 %v1547, 1.442695
      %v1579 = vpow.pop %v1578
      %v1580 = vadd.f32 %v1549, 1.0
      %v1581 = vadd.f32 %v1551, 1.0
      %v1582 = vadd.f32 %v1553, 1.0
      %v1583 = vadd.f32 %v1555, 1.0
      %v1584 = vadd.f32 %v1557, 1.0
      %v1585 = vadd.f32 %v1559, 1.0
      %v1586 = vadd.f32 %v1561, 1.0
      %v1587 = vadd.f32 %v1563, 1.0
      %v1588 = vadd.f32 %v1565, 1.0
      %v1589 = vadd.f32 %v1567, 1.0
      %v1590 = vadd.f32 %v1569, 1.0
      %v1591 = vadd.f32 %v1571, 1.0
      %v1592 = vadd.f32 %v1573, 1.0
      %v1593 = vadd.f32 %v1575, 1.0
      %v1594 = vadd.f32 %v1577, 1.0
      %v1595 = vadd.f32 %v1579, 1.0
      %v1596 = vrcp.pop %v1580
      %v1597 = vmul.f32 1.0, %v1596
      %v1598 = vrcp.pop %v1581
      %v1599 = vmul.f32 1.0, %v1598
      %v1600 = vrcp.pop %v1582
      %v1601 = vmul.f32 1.0, %v1600
      %v1602 = vrcp.pop %v1583
      %v1603 = vmul.f32 1.0, %v1602
      %v1604 = vrcp.pop %v1584
      %v1605 = vmul.f32 1.0, %v1604
      %v1606 = vrcp.pop %v1585
      %v1607 = vmul.f32 1.0, %v1606
      %v1608 = vrcp.pop %v1586
      %v1609 = vmul.f32 1.0, %v1608
      %v1610 = vrcp.pop %v1587
      %v1611 = vmul.f32 1.0, %v1610
      %v1612 = vrcp.pop %v1588
      %v1613 = vmul.f32 1.0, %v1612
      %v1614 = vrcp.pop %v1589
      %v1615 = vmul.f32 1.0, %v1614
      %v1616 = vrcp.pop %v1590
      %v1617 = vmul.f32 1.0, %v1616
      %v1618 = vrcp.pop %v1591
      %v1619 = vmul.f32 1.0, %v1618
      %v1620 = vrcp.pop %v1592
      %v1621 = vmul.f32 1.0, %v1620
      %v1622 = vrcp.pop %v1593
      %v1623 = vmul.f32 1.0, %v1622
      %v1624 = vrcp.pop %v1594
      %v1625 = vmul.f32 1.0, %v1624
      %v1626 = vrcp.pop %v1595
      %v1627 = vmul.f32 1.0, %v1626
      %vm1628 = vcmask 0
      %1629 = vst.msk [vmem:[%s317] sm:$0x1] %vm1628, %v1597
      %1630 = vst.msk [vmem:[%s317 + $0x1] sm:$0x1] %vm1628, %v1599
      %1631 = vst.msk [vmem:[%s317 + $0x2] sm:$0x1] %vm1628, %v1601
      %1632 = vst.msk [vmem:[%s317 + $0x3] sm:$0x1] %vm1628, %v1603
      %1633 = vst.msk [vmem:[%s317 + $0x4] sm:$0x1] %vm1628, %v1605
      %1634 = vst.msk [vmem:[%s317 + $0x5] sm:$0x1] %vm1628, %v1607
      %1635 = vst.msk [vmem:[%s317 + $0x6] sm:$0x1] %vm1628, %v1609
      %1636 = vst.msk [vmem:[%s317 + $0x7] sm:$0x1] %vm1628, %v1611
      %1637 = vst.msk [vmem:[%s317 + $0x8] sm:$0x1] %vm1628, %v1613
      %1638 = vst.msk [vmem:[%s317 + $0x9] sm:$0x1] %vm1628, %v1615
      %1639 = vst.msk [vmem:[%s317 + $0xa] sm:$0x1] %vm1628, %v1617
      %1640 = vst.msk [vmem:[%s317 + $0xb] sm:$0x1] %vm1628, %v1619
      %1641 = vst.msk [vmem:[%s317 + $0xc] sm:$0x1] %vm1628, %v1621
      %1642 = vst.msk [vmem:[%s317 + $0xd] sm:$0x1] %vm1628, %v1623
      %1643 = vst.msk [vmem:[%s317 + $0xe] sm:$0x1] %vm1628, %v1625
      %1644 = vst.msk [vmem:[%s317 + $0xf] sm:$0x1] %vm1628, %v1627
      %1645 = vxpose.xlu0.b32.start [1/16] %v1225, 128
      %1646 = vxpose.xlu0.b32.cont [2/16] %v1226, 128
      %1647 = vxpose.xlu0.b32.cont [3/16] 0.0, 128
      %1648 = vxpose.xlu0.b32.cont [4/16] 0.0, 128
      %1649 = vxpose.xlu0.b32.cont [5/16] 0.0, 128
      %1650 = vxpose.xlu0.b32.cont [6/16] 0.0, 128
      %1651 = vxpose.xlu0.b32.cont [7/16] 0.0, 128
      %1652 = vxpose.xlu0.b32.cont [8/16] 0.0, 128
      %1653 = vxpose.xlu0.b32.cont [9/16] 0.0, 128
      %1654 = vxpose.xlu0.b32.cont [10/16] 0.0, 128
      %1655 = vxpose.xlu0.b32.cont [11/16] 0.0, 128
      %1656 = vxpose.xlu0.b32.cont [12/16] 0.0, 128
      %1657 = vxpose.xlu0.b32.cont [13/16] 0.0, 128
      %1658 = vxpose.xlu0.b32.cont [14/16] 0.0, 128
      %1659 = vxpose.xlu0.b32.cont [15/16] 0.0, 128
      %1660 = vxpose.xlu0.b32.end [16/16] 0.0, 128
      %v1661 = vpop.trf.xlu0
      %v1662 = vpop.trf.xlu0
      %v1663 = vpop.trf.xlu0
      %v1664 = vpop.trf.xlu0
      %v1665 = vpop.trf.xlu0
      %v1666 = vpop.trf.xlu0
      %v1667 = vpop.trf.xlu0
      %v1668 = vpop.trf.xlu0
      %v1669 = vpop.trf.xlu0
      %v1670 = vpop.trf.xlu0
      %v1671 = vpop.trf.xlu0
      %v1672 = vpop.trf.xlu0
      %v1673 = vpop.trf.xlu0
      %v1674 = vpop.trf.xlu0
      %v1675 = vpop.trf.xlu0
      %v1676 = vpop.trf.xlu0
      %1677 = vxpose.xlu0.b32.start [1/16] %v1228, 128
      %1678 = vxpose.xlu0.b32.cont [2/16] %v1229, 128
      %1679 = vxpose.xlu0.b32.cont [3/16] 0.0, 128
      %1680 = vxpose.xlu0.b32.cont [4/16] 0.0, 128
      %1681 = vxpose.xlu0.b32.cont [5/16] 0.0, 128
      %1682 = vxpose.xlu0.b32.cont [6/16] 0.0, 128
      %1683 = vxpose.xlu0.b32.cont [7/16] 0.0, 128
      %1684 = vxpose.xlu0.b32.cont [8/16] 0.0, 128
      %1685 = vxpose.xlu0.b32.cont [9/16] 0.0, 128
      %1686 = vxpose.xlu0.b32.cont [10/16] 0.0, 128
      %1687 = vxpose.xlu0.b32.cont [11/16] 0.0, 128
      %1688 = vxpose.xlu0.b32.cont [12/16] 0.0, 128
      %1689 = vxpose.xlu0.b32.cont [13/16] 0.0, 128
      %1690 = vxpose.xlu0.b32.cont [14/16] 0.0, 128
      %1691 = vxpose.xlu0.b32.cont [15/16] 0.0, 128
      %1692 = vxpose.xlu0.b32.end [16/16] 0.0, 128
      %v1693 = vpop.trf.xlu0
      %v1694 = vpop.trf.xlu0
      %v1695 = vpop.trf.xlu0
      %v1696 = vpop.trf.xlu0
      %v1697 = vpop.trf.xlu0
      %v1698 = vpop.trf.xlu0
      %v1699 = vpop.trf.xlu0
      %v1700 = vpop.trf.xlu0
      %v1701 = vpop.trf.xlu0
      %v1702 = vpop.trf.xlu0
      %v1703 = vpop.trf.xlu0
      %v1704 = vpop.trf.xlu0
      %v1705 = vpop.trf.xlu0
      %v1706 = vpop.trf.xlu0
      %v1707 = vpop.trf.xlu0
      %v1708 = vpop.trf.xlu0
      %1709 = vxpose.xlu0.b32.start [1/16] %v1231, 128
      %1710 = vxpose.xlu0.b32.cont [2/16] %v1232, 128
      %1711 = vxpose.xlu0.b32.cont [3/16] 0.0, 128
      %1712 = vxpose.xlu0.b32.cont [4/16] 0.0, 128
      %1713 = vxpose.xlu0.b32.cont [5/16] 0.0, 128
      %1714 = vxpose.xlu0.b32.cont [6/16] 0.0, 128
      %1715 = vxpose.xlu0.b32.cont [7/16] 0.0, 128
      %1716 = vxpose.xlu0.b32.cont [8/16] 0.0, 128
      %1717 = vxpose.xlu0.b32.cont [9/16] 0.0, 128
      %1718 = vxpose.xlu0.b32.cont [10/16] 0.0, 128
      %1719 = vxpose.xlu0.b32.cont [11/16] 0.0, 128
      %1720 = vxpose.xlu0.b32.cont [12/16] 0.0, 128
      %1721 = vxpose.xlu0.b32.cont [13/16] 0.0, 128
      %1722 = vxpose.xlu0.b32.cont [14/16] 0.0, 128
      %1723 = vxpose.xlu0.b32.cont [15/16] 0.0, 128
      %1724 = vxpose.xlu0.b32.end [16/16] 0.0, 128
      %v1725 = vpop.trf.xlu0
      %v1726 = vpop.trf.xlu0
      %v1727 = vpop.trf.xlu0
      %v1728 = vpop.trf.xlu0
      %v1729 = vpop.trf.xlu0
      %v1730 = vpop.trf.xlu0
      %v1731 = vpop.trf.xlu0
      %v1732 = vpop.trf.xlu0
      %v1733 = vpop.trf.xlu0
      %v1734 = vpop.trf.xlu0
      %v1735 = vpop.trf.xlu0
      %v1736 = vpop.trf.xlu0
      %v1737 = vpop.trf.xlu0
      %v1738 = vpop.trf.xlu0
      %v1739 = vpop.trf.xlu0
      %v1740 = vpop.trf.xlu0
      %1741 = vxpose.xlu0.b32.start [1/16] %v1234, 128
      %1742 = vxpose.xlu0.b32.cont [2/16] %v1235, 128
      %1743 = vxpose.xlu0.b32.cont [3/16] 0.0, 128
      %1744 = vxpose.xlu0.b32.cont [4/16] 0.0, 128
      %1745 = vxpose.xlu0.b32.cont [5/16] 0.0, 128
      %1746 = vxpose.xlu0.b32.cont [6/16] 0.0, 128
      %1747 = vxpose.xlu0.b32.cont [7/16] 0.0, 128
      %1748 = vxpose.xlu0.b32.cont [8/16] 0.0, 128
      %1749 = vxpose.xlu0.b32.cont [9/16] 0.0, 128
      %1750 = vxpose.xlu0.b32.cont [10/16] 0.0, 128
      %1751 = vxpose.xlu0.b32.cont [11/16] 0.0, 128
      %1752 = vxpose.xlu0.b32.cont [12/16] 0.0, 128
      %1753 = vxpose.xlu0.b32.cont [13/16] 0.0, 128
      %1754 = vxpose.xlu0.b32.cont [14/16] 0.0, 128
      %1755 = vxpose.xlu0.b32.cont [15/16] 0.0, 128
      %1756 = vxpose.xlu0.b32.end [16/16] 0.0, 128
      %v1757 = vpop.trf.xlu0
      %v1758 = vpop.trf.xlu0
      %v1759 = vpop.trf.xlu0
      %v1760 = vpop.trf.xlu0
      %v1761 = vpop.trf.xlu0
      %v1762 = vpop.trf.xlu0
      %v1763 = vpop.trf.xlu0
      %v1764 = vpop.trf.xlu0
      %v1765 = vpop.trf.xlu0
      %v1766 = vpop.trf.xlu0
      %v1767 = vpop.trf.xlu0
      %v1768 = vpop.trf.xlu0
      %v1769 = vpop.trf.xlu0
      %v1770 = vpop.trf.xlu0
      %v1771 = vpop.trf.xlu0
      %v1772 = vpop.trf.xlu0
      %1773 = vxpose.xlu0.b32.start [1/16] %v1237, 128
      %1774 = vxpose.xlu0.b32.cont [2/16] %v1238, 128
      %1775 = vxpose.xlu0.b32.cont [3/16] 0.0, 128
      %1776 = vxpose.xlu0.b32.cont [4/16] 0.0, 128
      %1777 = vxpose.xlu0.b32.cont [5/16] 0.0, 128
      %1778 = vxpose.xlu0.b32.cont [6/16] 0.0, 128
      %1779 = vxpose.xlu0.b32.cont [7/16] 0.0, 128
      %1780 = vxpose.xlu0.b32.cont [8/16] 0.0, 128
      %1781 = vxpose.xlu0.b32.cont [9/16] 0.0, 128
      %1782 = vxpose.xlu0.b32.cont [10/16] 0.0, 128
      %1783 = vxpose.xlu0.b32.cont [11/16] 0.0, 128
      %1784 = vxpose.xlu0.b32.cont [12/16] 0.0, 128
      %1785 = vxpose.xlu0.b32.cont [13/16] 0.0, 128
      %1786 = vxpose.xlu0.b32.cont [14/16] 0.0, 128
      %1787 = vxpose.xlu0.b32.cont [15/16] 0.0, 128
      %1788 = vxpose.xlu0.b32.end [16/16] 0.0, 128
      %v1789 = vpop.trf.xlu0
      %v1790 = vpop.trf.xlu0
      %v1791 = vpop.trf.xlu0
      %v1792 = vpop.trf.xlu0
      %v1793 = vpop.trf.xlu0
      %v1794 = vpop.trf.xlu0
      %v1795 = vpop.trf.xlu0
      %v1796 = vpop.trf.xlu0
      %v1797 = vpop.trf.xlu0
      %v1798 = vpop.trf.xlu0
      %v1799 = vpop.trf.xlu0
      %v1800 = vpop.trf.xlu0
      %v1801 = vpop.trf.xlu0
      %v1802 = vpop.trf.xlu0
      %v1803 = vpop.trf.xlu0
      %v1804 = vpop.trf.xlu0
      %1805 = vxpose.xlu0.b32.start [1/16] %v1240, 128
      %1806 = vxpose.xlu0.b32.cont [2/16] %v1241, 128
      %1807 = vxpose.xlu0.b32.cont [3/16] 0.0, 128
      %1808 = vxpose.xlu0.b32.cont [4/16] 0.0, 128
      %1809 = vxpose.xlu0.b32.cont [5/16] 0.0, 128
      %1810 = vxpose.xlu0.b32.cont [6/16] 0.0, 128
      %1811 = vxpose.xlu0.b32.cont [7/16] 0.0, 128
      %1812 = vxpose.xlu0.b32.cont [8/16] 0.0, 128
      %1813 = vxpose.xlu0.b32.cont [9/16] 0.0, 128
      %1814 = vxpose.xlu0.b32.cont [10/16] 0.0, 128
      %1815 = vxpose.xlu0.b32.cont [11/16] 0.0, 128
      %1816 = vxpose.xlu0.b32.cont [12/16] 0.0, 128
      %1817 = vxpose.xlu0.b32.cont [13/16] 0.0, 128
      %1818 = vxpose.xlu0.b32.cont [14/16] 0.0, 128
      %1819 = vxpose.xlu0.b32.cont [15/16] 0.0, 128
      %1820 = vxpose.xlu0.b32.end [16/16] 0.0, 128
      %v1821 = vpop.trf.xlu0
      %v1822 = vpop.trf.xlu0
      %v1823 = vpop.trf.xlu0
      %v1824 = vpop.trf.xlu0
      %v1825 = vpop.trf.xlu0
      %v1826 = vpop.trf.xlu0
      %v1827 = vpop.trf.xlu0
      %v1828 = vpop.trf.xlu0
      %v1829 = vpop.trf.xlu0
      %v1830 = vpop.trf.xlu0
      %v1831 = vpop.trf.xlu0
      %v1832 = vpop.trf.xlu0
      %v1833 = vpop.trf.xlu0
      %v1834 = vpop.trf.xlu0
      %v1835 = vpop.trf.xlu0
      %v1836 = vpop.trf.xlu0
      %1837 = vxpose.xlu0.b32.start [1/16] %v1243, 128
      %1838 = vxpose.xlu0.b32.cont [2/16] %v1244, 128
      %1839 = vxpose.xlu0.b32.cont [3/16] 0.0, 128
      %1840 = vxpose.xlu0.b32.cont [4/16] 0.0, 128
      %1841 = vxpose.xlu0.b32.cont [5/16] 0.0, 128
      %1842 = vxpose.xlu0.b32.cont [6/16] 0.0, 128
      %1843 = vxpose.xlu0.b32.cont [7/16] 0.0, 128
      %1844 = vxpose.xlu0.b32.cont [8/16] 0.0, 128
      %1845 = vxpose.xlu0.b32.cont [9/16] 0.0, 128
      %1846 = vxpose.xlu0.b32.cont [10/16] 0.0, 128
      %1847 = vxpose.xlu0.b32.cont [11/16] 0.0, 128
      %1848 = vxpose.xlu0.b32.cont [12/16] 0.0, 128
      %1849 = vxpose.xlu0.b32.cont [13/16] 0.0, 128
      %1850 = vxpose.xlu0.b32.cont [14/16] 0.0, 128
      %1851 = vxpose.xlu0.b32.cont [15/16] 0.0, 128
      %1852 = vxpose.xlu0.b32.end [16/16] 0.0, 128
      %v1853 = vpop.trf.xlu0
      %v1854 = vpop.trf.xlu0
      %v1855 = vpop.trf.xlu0
      %v1856 = vpop.trf.xlu0
      %v1857 = vpop.trf.xlu0
      %v1858 = vpop.trf.xlu0
      %v1859 = vpop.trf.xlu0
      %v1860 = vpop.trf.xlu0
      %v1861 = vpop.trf.xlu0
      %v1862 = vpop.trf.xlu0
      %v1863 = vpop.trf.xlu0
      %v1864 = vpop.trf.xlu0
      %v1865 = vpop.trf.xlu0
      %v1866 = vpop.trf.xlu0
      %v1867 = vpop.trf.xlu0
      %v1868 = vpop.trf.xlu0
      %1869 = vxpose.xlu0.b32.start [1/16] %v1246, 128
      %1870 = vxpose.xlu0.b32.cont [2/16] %v1247, 128
      %1871 = vxpose.xlu0.b32.cont [3/16] 0.0, 128
      %1872 = vxpose.xlu0.b32.cont [4/16] 0.0, 128
      %1873 = vxpose.xlu0.b32.cont [5/16] 0.0, 128
      %1874 = vxpose.xlu0.b32.cont [6/16] 0.0, 128
      %1875 = vxpose.xlu0.b32.cont [7/16] 0.0, 128
      %1876 = vxpose.xlu0.b32.cont [8/16] 0.0, 128
      %1877 = vxpose.xlu0.b32.cont [9/16] 0.0, 128
      %1878 = vxpose.xlu0.b32.cont [10/16] 0.0, 128
      %1879 = vxpose.xlu0.b32.cont [11/16] 0.0, 128
      %1880 = vxpose.xlu0.b32.cont [12/16] 0.0, 128
      %1881 = vxpose.xlu0.b32.cont [13/16] 0.0, 128
      %1882 = vxpose.xlu0.b32.cont [14/16] 0.0, 128
      %1883 = vxpose.xlu0.b32.cont [15/16] 0.0, 128
      %1884 = vxpose.xlu0.b32.end [16/16] 0.0, 128
      %v1885 = vpop.trf.xlu0
      %v1886 = vpop.trf.xlu0
      %v1887 = vpop.trf.xlu0
      %v1888 = vpop.trf.xlu0
      %v1889 = vpop.trf.xlu0
      %v1890 = vpop.trf.xlu0
      %v1891 = vpop.trf.xlu0
      %v1892 = vpop.trf.xlu0
      %v1893 = vpop.trf.xlu0
      %v1894 = vpop.trf.xlu0
      %v1895 = vpop.trf.xlu0
      %v1896 = vpop.trf.xlu0
      %v1897 = vpop.trf.xlu0
      %v1898 = vpop.trf.xlu0
      %v1899 = vpop.trf.xlu0
      %v1900 = vpop.trf.xlu0
      %1901 = vxpose.xlu0.b32.start [1/16] %v1249, 128
      %1902 = vxpose.xlu0.b32.cont [2/16] %v1250, 128
      %1903 = vxpose.xlu0.b32.cont [3/16] 0.0, 128
      %1904 = vxpose.xlu0.b32.cont [4/16] 0.0, 128
      %1905 = vxpose.xlu0.b32.cont [5/16] 0.0, 128
      %1906 = vxpose.xlu0.b32.cont [6/16] 0.0, 128
      %1907 = vxpose.xlu0.b32.cont [7/16] 0.0, 128
      %1908 = vxpose.xlu0.b32.cont [8/16] 0.0, 128
      %1909 = vxpose.xlu0.b32.cont [9/16] 0.0, 128
      %1910 = vxpose.xlu0.b32.cont [10/16] 0.0, 128
      %1911 = vxpose.xlu0.b32.cont [11/16] 0.0, 128
      %1912 = vxpose.xlu0.b32.cont [12/16] 0.0, 128
      %1913 = vxpose.xlu0.b32.cont [13/16] 0.0, 128
      %1914 = vxpose.xlu0.b32.cont [14/16] 0.0, 128
      %1915 = vxpose.xlu0.b32.cont [15/16] 0.0, 128
      %1916 = vxpose.xlu0.b32.end [16/16] 0.0, 128
      %v1917 = vpop.trf.xlu0
      %v1918 = vpop.trf.xlu0
      %v1919 = vpop.trf.xlu0
      %v1920 = vpop.trf.xlu0
      %v1921 = vpop.trf.xlu0
      %v1922 = vpop.trf.xlu0
      %v1923 = vpop.trf.xlu0
      %v1924 = vpop.trf.xlu0
      %v1925 = vpop.trf.xlu0
      %v1926 = vpop.trf.xlu0
      %v1927 = vpop.trf.xlu0
      %v1928 = vpop.trf.xlu0
      %v1929 = vpop.trf.xlu0
      %v1930 = vpop.trf.xlu0
      %v1931 = vpop.trf.xlu0
      %v1932 = vpop.trf.xlu0
      %1933 = vxpose.xlu0.b32.start [1/16] %v1252, 128
      %1934 = vxpose.xlu0.b32.cont [2/16] %v1253, 128
      %1935 = vxpose.xlu0.b32.cont [3/16] 0.0, 128
      %1936 = vxpose.xlu0.b32.cont [4/16] 0.0, 128
      %1937 = vxpose.xlu0.b32.cont [5/16] 0.0, 128
      %1938 = vxpose.xlu0.b32.cont [6/16] 0.0, 128
      %1939 = vxpose.xlu0.b32.cont [7/16] 0.0, 128
      %1940 = vxpose.xlu0.b32.cont [8/16] 0.0, 128
      %1941 = vxpose.xlu0.b32.cont [9/16] 0.0, 128
      %1942 = vxpose.xlu0.b32.cont [10/16] 0.0, 128
      %1943 = vxpose.xlu0.b32.cont [11/16] 0.0, 128
      %1944 = vxpose.xlu0.b32.cont [12/16] 0.0, 128
      %1945 = vxpose.xlu0.b32.cont [13/16] 0.0, 128
      %1946 = vxpose.xlu0.b32.cont [14/16] 0.0, 128
      %1947 = vxpose.xlu0.b32.cont [15/16] 0.0, 128
      %1948 = vxpose.xlu0.b32.end [16/16] 0.0, 128
      %v1949 = vpop.trf.xlu0
      %v1950 = vpop.trf.xlu0
      %v1951 = vpop.trf.xlu0
      %v1952 = vpop.trf.xlu0
      %v1953 = vpop.trf.xlu0
      %v1954 = vpop.trf.xlu0
      %v1955 = vpop.trf.xlu0
      %v1956 = vpop.trf.xlu0
      %v1957 = vpop.trf.xlu0
      %v1958 = vpop.trf.xlu0
      %v1959 = vpop.trf.xlu0
      %v1960 = vpop.trf.xlu0
      %v1961 = vpop.trf.xlu0
      %v1962 = vpop.trf.xlu0
      %v1963 = vpop.trf.xlu0
      %v1964 = vpop.trf.xlu0
      %1965 = vxpose.xlu0.b32.start [1/16] %v1255, 128
      %1966 = vxpose.xlu0.b32.cont [2/16] %v1256, 128
      %1967 = vxpose.xlu0.b32.cont [3/16] 0.0, 128
      %1968 = vxpose.xlu0.b32.cont [4/16] 0.0, 128
      %1969 = vxpose.xlu0.b32.cont [5/16] 0.0, 128
      %1970 = vxpose.xlu0.b32.cont [6/16] 0.0, 128
      %1971 = vxpose.xlu0.b32.cont [7/16] 0.0, 128
      %1972 = vxpose.xlu0.b32.cont [8/16] 0.0, 128
      %1973 = vxpose.xlu0.b32.cont [9/16] 0.0, 128
      %1974 = vxpose.xlu0.b32.cont [10/16] 0.0, 128
      %1975 = vxpose.xlu0.b32.cont [11/16] 0.0, 128
      %1976 = vxpose.xlu0.b32.cont [12/16] 0.0, 128
      %1977 = vxpose.xlu0.b32.cont [13/16] 0.0, 128
      %1978 = vxpose.xlu0.b32.cont [14/16] 0.0, 128
      %1979 = vxpose.xlu0.b32.cont [15/16] 0.0, 128
      %1980 = vxpose.xlu0.b32.end [16/16] 0.0, 128
      %v1981 = vpop.trf.xlu0
      %v1982 = vpop.trf.xlu0
      %v1983 = vpop.trf.xlu0
      %v1984 = vpop.trf.xlu0
      %v1985 = vpop.trf.xlu0
      %v1986 = vpop.trf.xlu0
      %v1987 = vpop.trf.xlu0
      %v1988 = vpop.trf.xlu0
      %v1989 = vpop.trf.xlu0
      %v1990 = vpop.trf.xlu0
      %v1991 = vpop.trf.xlu0
      %v1992 = vpop.trf.xlu0
      %v1993 = vpop.trf.xlu0
      %v1994 = vpop.trf.xlu0
      %v1995 = vpop.trf.xlu0
      %v1996 = vpop.trf.xlu0
      %1997 = vxpose.xlu0.b32.start [1/16] %v1258, 128
      %1998 = vxpose.xlu0.b32.cont [2/16] %v1259, 128
      %1999 = vxpose.xlu0.b32.cont [3/16] 0.0, 128
      %2000 = vxpose.xlu0.b32.cont [4/16] 0.0, 128
      %2001 = vxpose.xlu0.b32.cont [5/16] 0.0, 128
      %2002 = vxpose.xlu0.b32.cont [6/16] 0.0, 128
      %2003 = vxpose.xlu0.b32.cont [7/16] 0.0, 128
      %2004 = vxpose.xlu0.b32.cont [8/16] 0.0, 128
      %2005 = vxpose.xlu0.b32.cont [9/16] 0.0, 128
      %2006 = vxpose.xlu0.b32.cont [10/16] 0.0, 128
      %2007 = vxpose.xlu0.b32.cont [11/16] 0.0, 128
      %2008 = vxpose.xlu0.b32.cont [12/16] 0.0, 128
      %2009 = vxpose.xlu0.b32.cont [13/16] 0.0, 128
      %2010 = vxpose.xlu0.b32.cont [14/16] 0.0, 128
      %2011 = vxpose.xlu0.b32.cont [15/16] 0.0, 128
      %2012 = vxpose.xlu0.b32.end [16/16] 0.0, 128
      %v2013 = vpop.trf.xlu0
      %v2014 = vpop.trf.xlu0
      %v2015 = vpop.trf.xlu0
      %v2016 = vpop.trf.xlu0
      %v2017 = vpop.trf.xlu0
      %v2018 = vpop.trf.xlu0
      %v2019 = vpop.trf.xlu0
      %v2020 = vpop.trf.xlu0
      %v2021 = vpop.trf.xlu0
      %v2022 = vpop.trf.xlu0
      %v2023 = vpop.trf.xlu0
      %v2024 = vpop.trf.xlu0
      %v2025 = vpop.trf.xlu0
      %v2026 = vpop.trf.xlu0
      %v2027 = vpop.trf.xlu0
      %v2028 = vpop.trf.xlu0
      %2029 = vxpose.xlu0.b32.start [1/16] %v1261, 128
      %2030 = vxpose.xlu0.b32.cont [2/16] %v1262, 128
      %2031 = vxpose.xlu0.b32.cont [3/16] 0.0, 128
      %2032 = vxpose.xlu0.b32.cont [4/16] 0.0, 128
      %2033 = vxpose.xlu0.b32.cont [5/16] 0.0, 128
      %2034 = vxpose.xlu0.b32.cont [6/16] 0.0, 128
      %2035 = vxpose.xlu0.b32.cont [7/16] 0.0, 128
      %2036 = vxpose.xlu0.b32.cont [8/16] 0.0, 128
      %2037 = vxpose.xlu0.b32.cont [9/16] 0.0, 128
      %2038 = vxpose.xlu0.b32.cont [10/16] 0.0, 128
      %2039 = vxpose.xlu0.b32.cont [11/16] 0.0, 128
      %2040 = vxpose.xlu0.b32.cont [12/16] 0.0, 128
      %2041 = vxpose.xlu0.b32.cont [13/16] 0.0, 128
      %2042 = vxpose.xlu0.b32.cont [14/16] 0.0, 128
      %2043 = vxpose.xlu0.b32.cont [15/16] 0.0, 128
      %2044 = vxpose.xlu0.b32.end [16/16] 0.0, 128
      %v2045 = vpop.trf.xlu0
      %v2046 = vpop.trf.xlu0
      %v2047 = vpop.trf.xlu0
      %v2048 = vpop.trf.xlu0
      %v2049 = vpop.trf.xlu0
      %v2050 = vpop.trf.xlu0
      %v2051 = vpop.trf.xlu0
      %v2052 = vpop.trf.xlu0
      %v2053 = vpop.trf.xlu0
      %v2054 = vpop.trf.xlu0
      %v2055 = vpop.trf.xlu0
      %v2056 = vpop.trf.xlu0
      %v2057 = vpop.trf.xlu0
      %v2058 = vpop.trf.xlu0
      %v2059 = vpop.trf.xlu0
      %v2060 = vpop.trf.xlu0
      %2061 = vxpose.xlu0.b32.start [1/16] %v1264, 128
      %2062 = vxpose.xlu0.b32.cont [2/16] %v1265, 128
      %2063 = vxpose.xlu0.b32.cont [3/16] 0.0, 128
      %2064 = vxpose.xlu0.b32.cont [4/16] 0.0, 128
      %2065 = vxpose.xlu0.b32.cont [5/16] 0.0, 128
      %2066 = vxpose.xlu0.b32.cont [6/16] 0.0, 128
      %2067 = vxpose.xlu0.b32.cont [7/16] 0.0, 128
      %2068 = vxpose.xlu0.b32.cont [8/16] 0.0, 128
      %2069 = vxpose.xlu0.b32.cont [9/16] 0.0, 128
      %2070 = vxpose.xlu0.b32.cont [10/16] 0.0, 128
      %2071 = vxpose.xlu0.b32.cont [11/16] 0.0, 128
      %2072 = vxpose.xlu0.b32.cont [12/16] 0.0, 128
      %2073 = vxpose.xlu0.b32.cont [13/16] 0.0, 128
      %2074 = vxpose.xlu0.b32.cont [14/16] 0.0, 128
      %2075 = vxpose.xlu0.b32.cont [15/16] 0.0, 128
      %2076 = vxpose.xlu0.b32.end [16/16] 0.0, 128
      %v2077 = vpop.trf.xlu0
      %v2078 = vpop.trf.xlu0
      %v2079 = vpop.trf.xlu0
      %v2080 = vpop.trf.xlu0
      %v2081 = vpop.trf.xlu0
      %v2082 = vpop.trf.xlu0
      %v2083 = vpop.trf.xlu0
      %v2084 = vpop.trf.xlu0
      %v2085 = vpop.trf.xlu0
      %v2086 = vpop.trf.xlu0
      %v2087 = vpop.trf.xlu0
      %v2088 = vpop.trf.xlu0
      %v2089 = vpop.trf.xlu0
      %v2090 = vpop.trf.xlu0
      %v2091 = vpop.trf.xlu0
      %v2092 = vpop.trf.xlu0
      %2093 = vxpose.xlu0.b32.start [1/16] %v1267, 128
      %2094 = vxpose.xlu0.b32.cont [2/16] %v1268, 128
      %2095 = vxpose.xlu0.b32.cont [3/16] 0.0, 128
      %2096 = vxpose.xlu0.b32.cont [4/16] 0.0, 128
      %2097 = vxpose.xlu0.b32.cont [5/16] 0.0, 128
      %2098 = vxpose.xlu0.b32.cont [6/16] 0.0, 128
      %2099 = vxpose.xlu0.b32.cont [7/16] 0.0, 128
      %2100 = vxpose.xlu0.b32.cont [8/16] 0.0, 128
      %2101 = vxpose.xlu0.b32.cont [9/16] 0.0, 128
      %2102 = vxpose.xlu0.b32.cont [10/16] 0.0, 128
      %2103 = vxpose.xlu0.b32.cont [11/16] 0.0, 128
      %2104 = vxpose.xlu0.b32.cont [12/16] 0.0, 128
      %2105 = vxpose.xlu0.b32.cont [13/16] 0.0, 128
      %2106 = vxpose.xlu0.b32.cont [14/16] 0.0, 128
      %2107 = vxpose.xlu0.b32.cont [15/16] 0.0, 128
      %2108 = vxpose.xlu0.b32.end [16/16] 0.0, 128
      %v2109 = vpop.trf.xlu0
      %v2110 = vpop.trf.xlu0
      %v2111 = vpop.trf.xlu0
      %v2112 = vpop.trf.xlu0
      %v2113 = vpop.trf.xlu0
      %v2114 = vpop.trf.xlu0
      %v2115 = vpop.trf.xlu0
      %v2116 = vpop.trf.xlu0
      %v2117 = vpop.trf.xlu0
      %v2118 = vpop.trf.xlu0
      %v2119 = vpop.trf.xlu0
      %v2120 = vpop.trf.xlu0
      %v2121 = vpop.trf.xlu0
      %v2122 = vpop.trf.xlu0
      %v2123 = vpop.trf.xlu0
      %v2124 = vpop.trf.xlu0
      %2125 = vxpose.xlu0.b32.start [1/16] %v1270, 128
      %2126 = vxpose.xlu0.b32.cont [2/16] %v1271, 128
      %2127 = vxpose.xlu0.b32.cont [3/16] 0.0, 128
      %2128 = vxpose.xlu0.b32.cont [4/16] 0.0, 128
      %2129 = vxpose.xlu0.b32.cont [5/16] 0.0, 128
      %2130 = vxpose.xlu0.b32.cont [6/16] 0.0, 128
      %2131 = vxpose.xlu0.b32.cont [7/16] 0.0, 128
      %2132 = vxpose.xlu0.b32.cont [8/16] 0.0, 128
      %2133 = vxpose.xlu0.b32.cont [9/16] 0.0, 128
      %2134 = vxpose.xlu0.b32.cont [10/16] 0.0, 128
      %2135 = vxpose.xlu0.b32.cont [11/16] 0.0, 128
      %2136 = vxpose.xlu0.b32.cont [12/16] 0.0, 128
      %2137 = vxpose.xlu0.b32.cont [13/16] 0.0, 128
      %2138 = vxpose.xlu0.b32.cont [14/16] 0.0, 128
      %2139 = vxpose.xlu0.b32.cont [15/16] 0.0, 128
      %2140 = vxpose.xlu0.b32.end [16/16] 0.0, 128
      %v2141 = vpop.trf.xlu0
      %v2142 = vpop.trf.xlu0
      %v2143 = vpop.trf.xlu0
      %v2144 = vpop.trf.xlu0
      %v2145 = vpop.trf.xlu0
      %v2146 = vpop.trf.xlu0
      %v2147 = vpop.trf.xlu0
      %v2148 = vpop.trf.xlu0
      %v2149 = vpop.trf.xlu0
      %v2150 = vpop.trf.xlu0
      %v2151 = vpop.trf.xlu0
      %v2152 = vpop.trf.xlu0
      %v2153 = vpop.trf.xlu0
      %v2154 = vpop.trf.xlu0
      %v2155 = vpop.trf.xlu0
      %v2156 = vpop.trf.xlu0
      %vm2157 = vcmask 122880
      %2158 = vst.msk [vmem:[%s322] sm:$0x1] %vm2157, %v1661
      %2159 = vst.msk [vmem:[%s322 + $0x1] sm:$0x1] %vm2157, %v1693
      %2160 = vst.msk [vmem:[%s322 + $0x2] sm:$0x1] %vm2157, %v1725
      %2161 = vst.msk [vmem:[%s322 + $0x3] sm:$0x1] %vm2157, %v1757
      %2162 = vst.msk [vmem:[%s322 + $0x4] sm:$0x1] %vm2157, %v1789
      %2163 = vst.msk [vmem:[%s322 + $0x5] sm:$0x1] %vm2157, %v1821
      %2164 = vst.msk [vmem:[%s322 + $0x6] sm:$0x1] %vm2157, %v1853
      %2165 = vst.msk [vmem:[%s322 + $0x7] sm:$0x1] %vm2157, %v1885
      %2166 = vst.msk [vmem:[%s322 + $0x8] sm:$0x1] %vm2157, %v1917
      %2167 = vst.msk [vmem:[%s322 + $0x9] sm:$0x1] %vm2157, %v1949
      %2168 = vst.msk [vmem:[%s322 + $0xa] sm:$0x1] %vm2157, %v1981
      %2169 = vst.msk [vmem:[%s322 + $0xb] sm:$0x1] %vm2157, %v2013
      %2170 = vst.msk [vmem:[%s322 + $0xc] sm:$0x1] %vm2157, %v2045
      %2171 = vst.msk [vmem:[%s322 + $0xd] sm:$0x1] %vm2157, %v2077
      %2172 = vst.msk [vmem:[%s322 + $0xe] sm:$0x1] %vm2157, %v2109
      %2173 = vst.msk [vmem:[%s322 + $0xf] sm:$0x1] %vm2157, %v2141
      %s2174 = smul.u32 16, %s22
      %p2175 = scmp.lt.s32.totalorder %s2174, 31
      %s2176 = scalar_select %p2175, %s2174, 31
      %s2177 = scalar_lea.vmem %s7, %s2176
      %s2178 = smul.u32 16, %s22
      %p2179 = scmp.lt.s32.totalorder %s2178, 31
      %s2180 = scalar_select %p2179, %s2178, 31
      %s2181 = scalar_lea.vmem %s8, %s2180
      // Predicated region
      $region49: #{attention_mil_forward.1} parent=47 // pred_check
        %p2182 = pneg %p192
      $region50: #{attention_mil_forward.1} parent=47 // pred_check_branch
        %2184 = sbr.rel (%p2182) target = $region52
      $region51: #{attention_mil_forward.1} parent=47 // pred_region
        %s2185 = smul.u32 16, %s22
      $region52: #{attention_mil_forward.1} parent=47 // pred_fallthru
        _
      // Predicated region
      $region53: #{attention_mil_forward.1} parent=47 // pred_check
        %p2186 = pneg %p218
      $region54: #{attention_mil_forward.1} parent=47 // pred_check_branch
        %2188 = sbr.rel (%p2186) target = $region56
      $region55: #{attention_mil_forward.1} parent=47 // pred_region
        %s2189 = smul.u32 16, %s22
      $region56: #{attention_mil_forward.1} parent=47 // pred_fallthru
        _
    $region48: #{attention_mil_forward.1} parent=5 // pred_fallthru
      _
    %p2190 = scmp.le.s32.totalorder 2, %s17
    // Predicated region
    $region57: #{attention_mil_forward.1} parent=5 // pred_check
      %p2191 = pneg %p2190
    $region58: #{attention_mil_forward.1} parent=5 // pred_check_branch
      %2193 = sbr.rel (%p2191) target = $region60
    $region59: #{attention_mil_forward.1} parent=5 // pred_region
      %s2194 = ssub.s32 %s17, 2
      // Predicated region
      $region61: #{attention_mil_forward.1} parent=59 // pred_check
        %p2195 = pneg %p198
      $region62: #{attention_mil_forward.1} parent=59 // pred_check_branch
        %2197 = sbr.rel (%p2195) target = $region64
      $region63: #{attention_mil_forward.1} parent=59 // pred_region
        %s2198 = smul.u32 16, %s23
        %p2199 = scmp.lt.s32.totalorder %s2198, 31
        %s2200 = scalar_select %p2199, %s2198, 31
        %s2201 = scalar_lea.vmem %s7, %s2200
      $region64: #{attention_mil_forward.1} parent=59 // pred_fallthru
        _
      // Predicated region
      $region65: #{attention_mil_forward.1} parent=59 // pred_check
        %p2202 = pneg %p224
      $region66: #{attention_mil_forward.1} parent=59 // pred_check_branch
        %2204 = sbr.rel (%p2202) target = $region68
      $region67: #{attention_mil_forward.1} parent=59 // pred_region
        %s2205 = smul.u32 16, %s23
        %p2206 = scmp.lt.s32.totalorder %s2205, 31
        %s2207 = scalar_select %p2206, %s2205, 31
        %s2208 = scalar_lea.vmem %s8, %s2207
      $region68: #{attention_mil_forward.1} parent=59 // pred_fallthru
        _
    $region60: #{attention_mil_forward.1} parent=5 // pred_fallthru
      _
  $region6: #{attention_mil_forward.1} parent=0 // loop_footer
    %s21 = sadd.s32 1, %s17
  $region7: #{attention_mil_forward.1} parent=0 // loop_footer_branch
    %16 = sbr.rel target = $region3
  $region8: #{attention_mil_forward.1} parent=0 // loop_exit
    _

</llo_original>
